<compile_context>
chip_gen: v7x
topology: tpu7x:2x2x1
jax: 0.10.0
libtpu: 0.0.40
codegen_flags: <defaults>
</compile_context>

<pallas_src>
import jax
import jax.numpy as jnp
from jax.experimental import pallas as pl
from jax.experimental.pallas import tpu as pltpu

IMAGE_SIZE = 16            # small stand-in for the module's IMAGE_SIZE=100 (same arch)
NUM_CLASSES = 10
C1, C2 = 20, 50            # conv output channels
COUT_P = 128               # lane-padded conv output channels
VMEM_LIMIT_BYTES = 48 * 1024 * 1024   # > 16MiB (v5e) / 32MiB (v6e/v7x) defaults, < 64MiB v7x physical


def _round_up(x, m):
    return ((x + m - 1) // m) * m


HO = IMAGE_SIZE // 4                       # spatial size after the two 2x2 pools
HID = IMAGE_SIZE * IMAGE_SIZE
FLAT = C2 * HO * HO
K1P = _round_up(25 * 3, 128)               # conv1 im2col K: 75  -> 128
K2P = _round_up(25 * C1, 128)              # conv2 im2col K: 500 -> 512
TK = min(1024, _round_up(FLAT, 128))       # dense contraction tile
TN = min(1024, _round_up(HID, 128))        # dense output tile
FLAT_P = _round_up(FLAT, TK)
HID_P = _round_up(HID, TN)

_VMEM = pl.BlockSpec(memory_space=pltpu.MemorySpace.VMEM)


def _choose_tm(m, cap=512):
    """Row-tile for the conv stage: multiple of 16, <= cap, >=2 grid steps when possible."""
    tm = _round_up(max(1, (m + 1) // 2), 16)
    return max(16, min(cap, tm))


# -------------------------------------------- fused conv + bias + ReLU + 2x2 maxpool
def conv_pool_kernel(p_ref, w_ref, b_ref, o_ref):
    # p_ref: (4, tm, Kp) bf16 im2col patches (one slab per pooling phase)
    # w_ref: (Kp, 128) bf16;  b_ref: (1, 128) f32;  o_ref: (tm, 128) bf16
    ph, tm, kp = p_ref.shape
    lhs = p_ref[...].reshape(ph * tm, kp)              # layout-preserving (tm % 16 == 0)
    y = jnp.dot(lhs, w_ref[...], preferred_element_type=jnp.float32)
    y = y.reshape(ph, tm, y.shape[-1])
    best = jnp.max(y, axis=0)                          # max over the 4 pooling phases (VPU)
    o_ref[...] = jnp.maximum(best + b_ref[...], 0.0).astype(o_ref.dtype)


def _pool_phase_patches(xp, ho, wo, kh_kw=5):
    # xp: (N, H+4, W+4, Cin) zero-padded NHWC input (bf16).  For pooling phase
    # (dy,dx), output (i,j), tap (kh,kw): patch element = xp[2i+dy+kh, 2j+dx+kw].
    # Pure layout plumbing in XLA; all FLOPs run inside the Pallas kernel.
    phases = []
    for dy in (0, 1):
        for dx in (0, 1):
            taps = []
            for kh in range(kh_kw):
                for kw in range(kh_kw):
                    r0, c0 = dy + kh, dx + kw
                    taps.append(xp[:, r0:r0 + 2 * ho:2, c0:c0 + 2 * wo:2, :])
            phases.append(jnp.concatenate(taps, axis=-1))    # (N, ho, wo, 25*Cin)
    p = jnp.stack(phases, axis=0)                            # (4, N, ho, wo, K)
    return p.reshape(4, -1, p.shape[-1])                     # (4, M, K)


def conv_relu_pool(x_nhwc, w_kp, b_1c):
    n, h, w_, cin = x_nhwc.shape
    ho, wo = h // 2, w_ // 2
    kp, cout_p = w_kp.shape                                  # (Kp, 128)
    xp = jnp.pad(x_nhwc, ((0, 0), (2, 2), (2, 2), (0, 0)))   # padding=2, stride=1
    p = _pool_phase_patches(xp, ho, wo)                      # (4, M, 25*Cin) bf16
    m = p.shape[1]
    tm = _choose_tm(m)
    m_pad = _round_up(m, tm)
    # pad rows to a tile multiple and pad K to the lane multiple (zeros are inert)
    p = jnp.pad(p, ((0, 0), (0, m_pad - m), (0, kp - p.shape[2])))
    out = pl.pallas_call(
        conv_pool_kernel,
        out_shape=jax.ShapeDtypeStruct((m_pad, cout_p), jnp.bfloat16),
        grid=(m_pad // tm,),
        in_specs=[pl.BlockSpec((4, tm, kp), lambda i: (0, i, 0)),
                  pl.BlockSpec((kp, cout_p), lambda i: (0, 0)),
                  pl.BlockSpec((1, cout_p), lambda i: (0, 0))],
        out_specs=pl.BlockSpec((tm, cout_p), lambda i: (i, 0)),
        compiler_params=pltpu.CompilerParams(
            dimension_semantics=("parallel",),
            vmem_limit_bytes=VMEM_LIMIT_BYTES),
    )(p, w_kp, b_1c)
    return out[:m].reshape(n, ho, wo, cout_p)                # NHWC, 128-padded channels


# ------------------------------------------------------ grid-tiled big Linear (w3)
def dense_acc_kernel(x_ref, w_ref, b_ref, o_ref, acc_ref):
    @pl.when(pl.program_id(1) == 0)
    def _():
        acc_ref[...] = jnp.zeros_like(acc_ref)
    acc_ref[...] += jnp.dot(x_ref[...], w_ref[...],
                            preferred_element_type=jnp.float32)
    @pl.when(pl.program_id(1) == pl.num_programs(1) - 1)
    def _():
        o_ref[...] = (acc_ref[...] + b_ref[...]).astype(o_ref.dtype)


def dense_tiled(x, w, b, tk=TK, tn=TN):
    m, kp = x.shape
    _, np_ = w.shape
    return pl.pallas_call(
        dense_acc_kernel,
        out_shape=jax.ShapeDtypeStruct((m, np_), jnp.bfloat16),
        grid=(np_ // tn, kp // tk),                          # reduction axis last
        in_specs=[pl.BlockSpec((m, tk), lambda n_, k_: (0, k_)),
                  pl.BlockSpec((tk, tn), lambda n_, k_: (k_, n_)),
                  pl.BlockSpec((1, tn), lambda n_, k_: (0, n_))],
        out_specs=pl.BlockSpec((m, tn), lambda n_, k_: (0, n_)),
        scratch_shapes=[pltpu.VMEM((m, tn), jnp.float32)],
        compiler_params=pltpu.CompilerParams(
            dimension_semantics=("parallel", "arbitrary"),
            vmem_limit_bytes=VMEM_LIMIT_BYTES),
    )(x, w, b)


# ----------------------------------------------- final Linear + log-softmax (fused)
def dense_logsoftmax_kernel(x_ref, w_ref, b_ref, o_ref):
    y = jnp.dot(x_ref[...], w_ref[...],
                preferred_element_type=jnp.float32) + b_ref[...]
    # class dim is lane-padded to 128: mask padded columns out of the reductions
    col = jax.lax.broadcasted_iota(jnp.int32, y.shape, 1)
    y = jnp.where(col < NUM_CLASSES, y, -1e30)
    mx = jnp.max(y, axis=1, keepdims=True)
    s = jnp.sum(jnp.exp(y - mx), axis=1, keepdims=True)
    o_ref[...] = (y - mx) - jnp.log(s)


def dense_logsoftmax(x, w, b):
    m, nf = x.shape[0], w.shape[1]
    return pl.pallas_call(
        dense_logsoftmax_kernel,
        out_shape=jax.ShapeDtypeStruct((m, nf), jnp.float32),
        in_specs=[_VMEM, _VMEM, _VMEM],
        out_specs=_VMEM,
    )(x, w, b)


# ------------------------------------------------------------------------ params
def init_params(key):
    k = jax.random.split(key, 8)
    return {   # "torch-layout" f32 params (w3 rows in NCHW flatten order)
        "w1": jax.random.normal(k[0], (5, 5, 3, C1), jnp.float32) * 0.05,
        "b1": jax.random.normal(k[1], (C1,), jnp.float32) * 0.05,
        "w2": jax.random.normal(k[2], (5, 5, C1, C2), jnp.float32) * 0.05,
        "b2": jax.random.normal(k[3], (C2,), jnp.float32) * 0.05,
        "w3": jax.random.normal(k[4], (FLAT, HID), jnp.float32) * 0.02,
        "b3": jax.random.normal(k[5], (HID,), jnp.float32) * 0.02,
        "w4": jax.random.normal(k[6], (HID, NUM_CLASSES), jnp.float32) * 0.02,
        "b4": jax.random.normal(k[7], (NUM_CLASSES,), jnp.float32) * 0.02,
    }


def prepare_params(p):
    """One-time weight prep: fold 5x5 taps into K and pad K to a lane multiple,
    pad conv output channels / class dim to 128 lanes, permute w3 rows so the
    NHWC flatten feeds it directly, pad dense dims to tile multiples, cast
    weights to bf16 (biases stay f32)."""
    w1 = p["w1"].reshape(25 * 3, C1)
    w1 = jnp.pad(w1, ((0, K1P - 25 * 3), (0, COUT_P - C1))).astype(jnp.bfloat16)
    b1 = jnp.pad(p["b1"], (0, COUT_P - C1)).reshape(1, COUT_P).astype(jnp.float32)
    w2 = p["w2"].reshape(25 * C1, C2)
    w2 = jnp.pad(w2, ((0, K2P - 25 * C1), (0, COUT_P - C2))).astype(jnp.bfloat16)
    b2 = jnp.pad(p["b2"], (0, COUT_P - C2)).reshape(1, COUT_P).astype(jnp.float32)
    # NCHW-flatten row order (c,i,j)  ->  NHWC-flatten row order (i,j,c)
    w3 = p["w3"].reshape(C2, HO, HO, HID).transpose(1, 2, 0, 3).reshape(FLAT, HID)
    w3 = jnp.pad(w3, ((0, FLAT_P - FLAT), (0, HID_P - HID))).astype(jnp.bfloat16)
    b3 = jnp.pad(p["b3"], (0, HID_P - HID)).reshape(1, HID_P).astype(jnp.float32)
    w4 = jnp.pad(p["w4"], ((0, HID_P - HID), (0, 128 - NUM_CLASSES))).astype(jnp.bfloat16)
    b4 = jnp.pad(p["b4"], (0, 128 - NUM_CLASSES)).reshape(1, 128).astype(jnp.float32)
    return {"w1": w1, "b1": b1, "w2": w2, "b2": b2,
            "w3": w3, "b3": b3, "w4": w4, "b4": b4}


def forward(prep, x_nchw):
    n = x_nchw.shape[0]
    x = jnp.transpose(x_nchw, (0, 2, 3, 1)).astype(jnp.bfloat16)     # NCHW -> NHWC
    x = conv_relu_pool(x, prep["w1"], prep["b1"])[..., :C1]          # (N,H/2,W/2,20)
    x = conv_relu_pool(x, prep["w2"], prep["b2"])[..., :C2]          # (N,H/4,W/4,50)
    x = x.reshape(n, -1)                         # NHWC flatten (w3 rows pre-permuted)
    x = jnp.pad(x, ((0, 0), (0, FLAT_P - FLAT)))
    h = dense_tiled(x, prep["w3"], prep["b3"])                       # (N, HID_P) bf16
    out = dense_logsoftmax(h, prep["w4"], prep["b4"])                # (N, 128) f32
    return out[:, :NUM_CLASSES]                                      # (N, 10)


# ----------------------------------------------------------- pure-JAX reference
def reference(params, x_nchw):
    bf = lambda a: a.astype(jnp.bfloat16).astype(jnp.float32)        # mirror bf16 casts
    x = bf(jnp.transpose(x_nchw, (0, 2, 3, 1)))

    def conv(x, w, b):
        y = jax.lax.conv_general_dilated(
            x, bf(w), (1, 1), ((2, 2), (2, 2)),
            dimension_numbers=("NHWC", "HWIO", "NHWC"))
        return jax.nn.relu(y + b)

    def pool(x):
        return jax.lax.reduce_window(x, -jnp.inf, jax.lax.max,
                                     (1, 2, 2, 1), (1, 2, 2, 1), "VALID")

    x = bf(pool(conv(x, params["w1"], params["b1"])))
    x = bf(pool(conv(x, params["w2"], params["b2"])))
    x = jnp.transpose(x, (0, 3, 1, 2)).reshape(x.shape[0], -1)       # torch NCHW flatten
    h = bf(x @ bf(params["w3"]) + params["b3"])
    y = h @ bf(params["w4"]) + params["b4"]
    return jax.nn.log_softmax(y, axis=1)


if __name__ == "__main__":
    key = jax.random.PRNGKey(0)
    pkey, xkey = jax.random.split(key)
    params = init_params(pkey)
    prep = prepare_params(params)
    x = jax.random.normal(xkey, (2, 3, IMAGE_SIZE, IMAGE_SIZE), jnp.float32)

    out = jax.block_until_ready(jax.jit(forward)(prep, x))
    ref = jax.block_until_ready(reference(params, x))

    assert out.shape == (2, NUM_CLASSES), out.shape
    max_err = float(jnp.max(jnp.abs(out - ref)))
    assert jnp.allclose(out, ref, atol=1e-2, rtol=1e-2), max_err
    print("KERNEL_OK")
</pallas_src>

<mosaic_0001>
module attributes {stable_mosaic.version = 11 : i64} {
  func.func @conv_pool_kernel(%arg0: i32, %arg1: memref<4x64x128xbf16, #tpu.memory_space<vmem>>, %arg2: memref<128x128xbf16, #tpu.memory_space<vmem>>, %arg3: memref<1x128xf32, #tpu.memory_space<vmem>>, %arg4: memref<64x128xbf16, #tpu.memory_space<vmem>>) attributes {dimension_semantics = [#tpu.dimension_semantics<parallel>], iteration_bounds = array<i64: 2>, scalar_prefetch = 0 : i64, scratch_operands = 0 : i64, tpu.core_type = #tpu.core_type<tc>, window_params = [{transform_indices = @transform_0, window_bounds = array<i64: 4, 64, 128>}, {pipeline_mode = #tpu.pipeline_mode<synchronous>, transform_indices = @transform_1, window_bounds = array<i64: 128, 128>}, {pipeline_mode = #tpu.pipeline_mode<synchronous>, transform_indices = @transform_2, window_bounds = array<i64: 1, 128>}, {transform_indices = @transform_3, window_bounds = array<i64: 64, 128>}]} {
    %c0 = arith.constant 0 : index
    %c0_0 = arith.constant 0 : index
    %c0_1 = arith.constant 0 : index
    %0 = vector.load %arg1[%c0, %c0_0, %c0_1] : memref<4x64x128xbf16, #tpu.memory_space<vmem>>, vector<4x64x128xbf16>
    %1 = vector.shape_cast %0 : vector<4x64x128xbf16> to vector<256x128xbf16>
    %c0_2 = arith.constant 0 : index
    %c0_3 = arith.constant 0 : index
    %2 = vector.load %arg2[%c0_2, %c0_3] : memref<128x128xbf16, #tpu.memory_space<vmem>>, vector<128x128xbf16>
    %cst = arith.constant dense<0.000000e+00> : vector<256x128xf32>
    %3 = tpu.matmul %1, %2, %cst {dimension_numbers = #tpu.dot_dimension_numbers<[1], [0], [0], [1], [0, 0, 1, 1], [], []>} : vector<256x128xbf16>, vector<128x128xbf16>, vector<256x128xf32> -> vector<256x128xf32>
    %4 = vector.shape_cast %3 : vector<256x128xf32> to vector<4x64x128xf32>
    %cst_4 = arith.constant dense<0xFF800000> : vector<64x128xf32>
    %5 = vector.multi_reduction <maximumf>, %4, %cst_4 [0] : vector<4x64x128xf32> to vector<64x128xf32>
    %c0_5 = arith.constant 0 : index
    %c0_6 = arith.constant 0 : index
    %6 = vector.load %arg3[%c0_5, %c0_6] : memref<1x128xf32, #tpu.memory_space<vmem>>, vector<1x128xf32>
    %7 = vector.broadcast %6 : vector<1x128xf32> to vector<64x128xf32>
    %8 = arith.addf %5, %7 : vector<64x128xf32>
    %cst_7 = arith.constant 0.000000e+00 : f32
    %9 = vector.broadcast %cst_7 : f32 to vector<64x128xf32>
    %10 = arith.maximumf %8, %9 : vector<64x128xf32>
    %11 = arith.truncf %10 : vector<64x128xf32> to vector<64x128xbf16>
    %c0_8 = arith.constant 0 : index
    %c0_9 = arith.constant 0 : index
    %12 = vector.load %arg4[%c0_8, %c0_9] : memref<64x128xbf16, #tpu.memory_space<vmem>>, vector<64x128xbf16>
    tpu.vector_store %arg4[%c0_8, %c0_9], %11 {strides = array<i32>} : memref<64x128xbf16, #tpu.memory_space<vmem>>, vector<64x128xbf16>,
    return
  }
  func.func @transform_0(%arg0: i32) -> (i32, i32, i32) {
    %c0_i32 = arith.constant 0 : i32
    %c0_i32_0 = arith.constant 0 : i32
    %c0_i32_1 = arith.constant 0 : i32
    return %c0_i32, %arg0, %c0_i32_0 : i32, i32, i32
  }
  func.func @transform_1(%arg0: i32) -> (i32, i32) {
    %c0_i32 = arith.constant 0 : i32
    %c0_i32_0 = arith.constant 0 : i32
    %c0_i32_1 = arith.constant 0 : i32
    return %c0_i32, %c0_i32_0 : i32, i32
  }
  func.func @transform_2(%arg0: i32) -> (i32, i32) {
    %c0_i32 = arith.constant 0 : i32
    %c0_i32_0 = arith.constant 0 : i32
    %c0_i32_1 = arith.constant 0 : i32
    return %c0_i32, %c0_i32_0 : i32, i32
  }
  func.func @transform_3(%arg0: i32) -> (i32, i32) {
    %c0_i32 = arith.constant 0 : i32
    %c0_i32_0 = arith.constant 0 : i32
    return %arg0, %c0_i32 : i32, i32
  }
}

module attributes {stable_mosaic.version = 11 : i64} {
  func.func @conv_pool_kernel(%arg0: i32, %arg1: memref<4x16x512xbf16, #tpu.memory_space<vmem>>, %arg2: memref<512x128xbf16, #tpu.memory_space<vmem>>, %arg3: memref<1x128xf32, #tpu.memory_space<vmem>>, %arg4: memref<16x128xbf16, #tpu.memory_space<vmem>>) attributes {dimension_semantics = [#tpu.dimension_semantics<parallel>], iteration_bounds = array<i64: 2>, scalar_prefetch = 0 : i64, scratch_operands = 0 : i64, tpu.core_type = #tpu.core_type<tc>, window_params = [{transform_indices = @transform_0, window_bounds = array<i64: 4, 16, 512>}, {pipeline_mode = #tpu.pipeline_mode<synchronous>, transform_indices = @transform_1, window_bounds = array<i64: 512, 128>}, {pipeline_mode = #tpu.pipeline_mode<synchronous>, transform_indices = @transform_2, window_bounds = array<i64: 1, 128>}, {transform_indices = @transform_3, window_bounds = array<i64: 16, 128>}]} {
    %c0 = arith.constant 0 : index
    %c0_0 = arith.constant 0 : index
    %c0_1 = arith.constant 0 : index
    %0 = vector.load %arg1[%c0, %c0_0, %c0_1] : memref<4x16x512xbf16, #tpu.memory_space<vmem>>, vector<4x16x512xbf16>
    %1 = vector.shape_cast %0 : vector<4x16x512xbf16> to vector<64x512xbf16>
    %c0_2 = arith.constant 0 : index
    %c0_3 = arith.constant 0 : index
    %2 = vector.load %arg2[%c0_2, %c0_3] : memref<512x128xbf16, #tpu.memory_space<vmem>>, vector<512x128xbf16>
    %cst = arith.constant dense<0.000000e+00> : vector<64x128xf32>
    %3 = tpu.matmul %1, %2, %cst {dimension_numbers = #tpu.dot_dimension_numbers<[1], [0], [0], [1], [0, 0, 1, 1], [], []>} : vector<64x512xbf16>, vector<512x128xbf16>, vector<64x128xf32> -> vector<64x128xf32>
    %4 = vector.shape_cast %3 : vector<64x128xf32> to vector<4x16x128xf32>
    %cst_4 = arith.constant dense<0xFF800000> : vector<16x128xf32>
    %5 = vector.multi_reduction <maximumf>, %4, %cst_4 [0] : vector<4x16x128xf32> to vector<16x128xf32>
    %c0_5 = arith.constant 0 : index
    %c0_6 = arith.constant 0 : index
    %6 = vector.load %arg3[%c0_5, %c0_6] : memref<1x128xf32, #tpu.memory_space<vmem>>, vector<1x128xf32>
    %7 = vector.broadcast %6 : vector<1x128xf32> to vector<16x128xf32>
    %8 = arith.addf %5, %7 : vector<16x128xf32>
    %cst_7 = arith.constant 0.000000e+00 : f32
    %9 = vector.broadcast %cst_7 : f32 to vector<16x128xf32>
    %10 = arith.maximumf %8, %9 : vector<16x128xf32>
    %11 = arith.truncf %10 : vector<16x128xf32> to vector<16x128xbf16>
    %c0_8 = arith.constant 0 : index
    %c0_9 = arith.constant 0 : index
    %12 = vector.load %arg4[%c0_8, %c0_9] : memref<16x128xbf16, #tpu.memory_space<vmem>>, vector<16x128xbf16>
    tpu.vector_store %arg4[%c0_8, %c0_9], %11 {strides = array<i32>} : memref<16x128xbf16, #tpu.memory_space<vmem>>, vector<16x128xbf16>,
    return
  }
  func.func @transform_0(%arg0: i32) -> (i32, i32, i32) {
    %c0_i32 = arith.constant 0 : i32
    %c0_i32_0 = arith.constant 0 : i32
    %c0_i32_1 = arith.constant 0 : i32
    return %c0_i32, %arg0, %c0_i32_0 : i32, i32, i32
  }
  func.func @transform_1(%arg0: i32) -> (i32, i32) {
    %c0_i32 = arith.constant 0 : i32
    %c0_i32_0 = arith.constant 0 : i32
    %c0_i32_1 = arith.constant 0 : i32
    return %c0_i32, %c0_i32_0 : i32, i32
  }
  func.func @transform_2(%arg0: i32) -> (i32, i32) {
    %c0_i32 = arith.constant 0 : i32
    %c0_i32_0 = arith.constant 0 : i32
    %c0_i32_1 = arith.constant 0 : i32
    return %c0_i32, %c0_i32_0 : i32, i32
  }
  func.func @transform_3(%arg0: i32) -> (i32, i32) {
    %c0_i32 = arith.constant 0 : i32
    %c0_i32_0 = arith.constant 0 : i32
    return %arg0, %c0_i32 : i32, i32
  }
}

module attributes {stable_mosaic.version = 11 : i64} {
  func.func @dense_acc_kernel(%arg0: i32, %arg1: i32, %arg2: memref<2x896xbf16, #tpu.memory_space<vmem>>, %arg3: memref<896x256xbf16, #tpu.memory_space<vmem>>, %arg4: memref<1x256xf32, #tpu.memory_space<vmem>>, %arg5: memref<2x256xbf16, #tpu.memory_space<vmem>>, %arg6: memref<2x256xf32, #tpu.memory_space<vmem>>) attributes {dimension_semantics = [#tpu.dimension_semantics<parallel>, #tpu.dimension_semantics<arbitrary>], iteration_bounds = array<i64: 1, 1>, scalar_prefetch = 0 : i64, scratch_operands = 1 : i64, tpu.core_type = #tpu.core_type<tc>, window_params = [{transform_indices = @transform_0, window_bounds = array<i64: 2, 896>}, {transform_indices = @transform_1, window_bounds = array<i64: 896, 256>}, {transform_indices = @transform_2, window_bounds = array<i64: 1, 256>}, {transform_indices = @transform_3, window_bounds = array<i64: 2, 256>}]} {
    %c0_i32 = arith.constant 0 : i32
    %0 = arith.cmpi eq, %arg1, %c0_i32 : i32
    %1 = arith.extui %0 : i1 to i32
    %c0_i32_0 = arith.constant 0 : i32
    %2 = arith.cmpi ne, %1, %c0_i32_0 : i32
    scf.if %2 {
      %cst_10 = arith.constant 0.000000e+00 : f32
      %12 = vector.broadcast %cst_10 : f32 to vector<2x256xf32>
      %c0_11 = arith.constant 0 : index
      %c0_12 = arith.constant 0 : index
      %13 = vector.load %arg6[%c0_11, %c0_12] : memref<2x256xf32, #tpu.memory_space<vmem>>, vector<2x256xf32>
      tpu.vector_store %arg6[%c0_11, %c0_12], %12 {strides = array<i32>} : memref<2x256xf32, #tpu.memory_space<vmem>>, vector<2x256xf32>,
    } else {
    }
    %c0 = arith.constant 0 : index
    %c0_1 = arith.constant 0 : index
    %3 = vector.load %arg6[%c0, %c0_1] : memref<2x256xf32, #tpu.memory_space<vmem>>, vector<2x256xf32>
    %c0_2 = arith.constant 0 : index
    %c0_3 = arith.constant 0 : index
    %4 = vector.load %arg2[%c0_2, %c0_3] : memref<2x896xbf16, #tpu.memory_space<vmem>>, vector<2x896xbf16>
    %c0_4 = arith.constant 0 : index
    %c0_5 = arith.constant 0 : index
    %5 = vector.load %arg3[%c0_4, %c0_5] : memref<896x256xbf16, #tpu.memory_space<vmem>>, vector<896x256xbf16>
    %cst = arith.constant dense<0.000000e+00> : vector<2x256xf32>
    %6 = tpu.matmul %4, %5, %cst {dimension_numbers = #tpu.dot_dimension_numbers<[1], [0], [0], [1], [0, 0, 1, 1], [], []>} : vector<2x896xbf16>, vector<896x256xbf16>, vector<2x256xf32> -> vector<2x256xf32>
    %7 = arith.addf %3, %6 : vector<2x256xf32>
    %c0_6 = arith.constant 0 : index
    %c0_7 = arith.constant 0 : index
    %8 = vector.load %arg6[%c0_6, %c0_7] : memref<2x256xf32, #tpu.memory_space<vmem>>, vector<2x256xf32>
    tpu.vector_store %arg6[%c0_6, %c0_7], %7 {strides = array<i32>} : memref<2x256xf32, #tpu.memory_space<vmem>>, vector<2x256xf32>,
    %c0_i32_8 = arith.constant 0 : i32
    %9 = arith.cmpi eq, %arg1, %c0_i32_8 : i32
    %10 = arith.extui %9 : i1 to i32
    %c0_i32_9 = arith.constant 0 : i32
    %11 = arith.cmpi ne, %10, %c0_i32_9 : i32
    scf.if %11 {
      %c0_10 = arith.constant 0 : index
      %c0_11 = arith.constant 0 : index
      %12 = vector.load %arg6[%c0_10, %c0_11] : memref<2x256xf32, #tpu.memory_space<vmem>>, vector<2x256xf32>
      %c0_12 = arith.constant 0 : index
      %c0_13 = arith.constant 0 : index
      %13 = vector.load %arg4[%c0_12, %c0_13] : memref<1x256xf32, #tpu.memory_space<vmem>>, vector<1x256xf32>
      %14 = vector.broadcast %13 : vector<1x256xf32> to vector<2x256xf32>
      %15 = arith.addf %12, %14 : vector<2x256xf32>
      %16 = arith.truncf %15 : vector<2x256xf32> to vector<2x256xbf16>
      %c0_14 = arith.constant 0 : index
      %c0_15 = arith.constant 0 : index
      %17 = vector.load %arg5[%c0_14, %c0_15] : memref<2x256xbf16, #tpu.memory_space<vmem>>, vector<2x256xbf16>
      tpu.vector_store %arg5[%c0_14, %c0_15], %16 {strides = array<i32>} : memref<2x256xbf16, #tpu.memory_space<vmem>>, vector<2x256xbf16>,
    } else {
    }
    return
  }
  func.func @transform_0(%arg0: i32, %arg1: i32) -> (i32, i32) {
    %c0_i32 = arith.constant 0 : i32
    %c0_i32_0 = arith.constant 0 : i32
    return %c0_i32, %arg1 : i32, i32
  }
  func.func @transform_1(%arg0: i32, %arg1: i32) -> (i32, i32) {
    %c0_i32 = arith.constant 0 : i32
    return %arg1, %arg0 : i32, i32
  }
  func.func @transform_2(%arg0: i32, %arg1: i32) -> (i32, i32) {
    %c0_i32 = arith.constant 0 : i32
    %c0_i32_0 = arith.constant 0 : i32
    return %c0_i32, %arg0 : i32, i32
  }
  func.func @transform_3(%arg0: i32, %arg1: i32) -> (i32, i32) {
    %c0_i32 = arith.constant 0 : i32
    %c0_i32_0 = arith.constant 0 : i32
    return %c0_i32, %arg0 : i32, i32
  }
}

module attributes {stable_mosaic.version = 11 : i64} {
  func.func @dense_logsoftmax_kernel(%arg0: memref<2x256xbf16, #tpu.memory_space<vmem>>, %arg1: memref<256x128xbf16, #tpu.memory_space<vmem>>, %arg2: memref<1x128xf32, #tpu.memory_space<vmem>>, %arg3: memref<2x128xf32, #tpu.memory_space<vmem>>) attributes {dimension_semantics = [], scalar_prefetch = 0 : i64, scratch_operands = 0 : i64, tpu.core_type = #tpu.core_type<tc>} {
    %c0 = arith.constant 0 : index
    %c0_0 = arith.constant 0 : index
    %0 = vector.load %arg0[%c0, %c0_0] : memref<2x256xbf16, #tpu.memory_space<vmem>>, vector<2x256xbf16>
    %c0_1 = arith.constant 0 : index
    %c0_2 = arith.constant 0 : index
    %1 = vector.load %arg1[%c0_1, %c0_2] : memref<256x128xbf16, #tpu.memory_space<vmem>>, vector<256x128xbf16>
    %cst = arith.constant dense<0.000000e+00> : vector<2x128xf32>
    %2 = tpu.matmul %0, %1, %cst {dimension_numbers = #tpu.dot_dimension_numbers<[1], [0], [0], [1], [0, 0, 1, 1], [], []>} : vector<2x256xbf16>, vector<256x128xbf16>, vector<2x128xf32> -> vector<2x128xf32>
    %c0_3 = arith.constant 0 : index
    %c0_4 = arith.constant 0 : index
    %3 = vector.load %arg2[%c0_3, %c0_4] : memref<1x128xf32, #tpu.memory_space<vmem>>, vector<1x128xf32>
    %4 = vector.broadcast %3 : vector<1x128xf32> to vector<2x128xf32>
    %5 = arith.addf %2, %4 : vector<2x128xf32>
    %6 = tpu.iota {dimensions = array<i32: 1>} : vector<2x128xi32>
    %c10_i32 = arith.constant 10 : i32
    %7 = vector.broadcast %c10_i32 : i32 to vector<2x128xi32>
    %8 = arith.cmpi slt, %6, %7 : vector<2x128xi32>
    %cst_5 = arith.constant -1.000000e+30 : f32
    %9 = vector.broadcast %cst_5 : f32 to vector<2x128xf32>
    %10 = arith.select %8, %5, %9 : vector<2x128xi1>, vector<2x128xf32>
    %cst_6 = arith.constant dense<0xFF800000> : vector<2xf32>
    %11 = vector.multi_reduction <maximumf>, %10, %cst_6 [1] : vector<2x128xf32> to vector<2xf32>
    %12 = vector.shape_cast %11 : vector<2xf32> to vector<2x1xf32>
    %13 = vector.broadcast %12 : vector<2x1xf32> to vector<2x128xf32>
    %14 = arith.subf %10, %13 : vector<2x128xf32>
    %15 = math.exp %14 : vector<2x128xf32>
    %cst_7 = arith.constant dense<0.000000e+00> : vector<2xf32>
    %16 = vector.multi_reduction <add>, %15, %cst_7 [1] : vector<2x128xf32> to vector<2xf32>
    %17 = vector.shape_cast %16 : vector<2xf32> to vector<2x1xf32>
    %18 = vector.broadcast %12 : vector<2x1xf32> to vector<2x128xf32>
    %19 = arith.subf %10, %18 : vector<2x128xf32>
    %20 = math.log %17 : vector<2x1xf32>
    %21 = vector.broadcast %20 : vector<2x1xf32> to vector<2x128xf32>
    %22 = arith.subf %19, %21 : vector<2x128xf32>
    %c0_8 = arith.constant 0 : index
    %c0_9 = arith.constant 0 : index
    %23 = vector.load %arg3[%c0_8, %c0_9] : memref<2x128xf32, #tpu.memory_space<vmem>>, vector<2x128xf32>
    tpu.vector_store %arg3[%c0_8, %c0_9], %22 {strides = array<i32>} : memref<2x128xf32, #tpu.memory_space<vmem>>, vector<2x128xf32>,
    return
  }
}

</mosaic_0001>

<llo_original>
// kernel: forward.4
$region0: #{forward.4}
  #allocation0 [shape = 'u32[]', space=smem, size = 0x4, offset = 0x4, fixed_abs, tag = 'smem constant byte address 0x4 - core index']
  #allocation1 [shape = 'u32[144,128]{1,0:T(1,128)}', space=vmem, size = 0x12000, scoped, tag = 'internal scratch']
  %s0 = inlined_call_operand.vmem [shape: bf16[4,128,128], index: 0, kind: input, shape index: {}]
  %s1 = inlined_call_operand.vmem [shape: bf16[128,128], index: 1, kind: input, shape index: {}]
  %s2 = inlined_call_operand.vmem [shape: f32[1,128], index: 2, kind: input, shape index: {}]
  %s3 = inlined_call_operand.vmem [shape: bf16[128,128], index: 3, kind: output, shape index: {}]
  %s4 = sld [smem:[#allocation0]]
  $region86: #{forward.4} parent=0
    _
  %s6 = ssub.s32 1, %s4
  %s7 = scalar_select 0, %s6, %s4
  $region1: #{forward.4} parent=0
    #allocation2 [shape = 'u8[131072]{0}', space=vmem, size = 0x20000, scoped, tag = 'input window, operand 0']
    loop: start=0, step=1, limit=4
    $region2: #{forward.4} parent=1 // loop_pre_header
      _
    $region3: #{forward.4} parent=1 // loop_header
      %s9 = sphi 0, %s13
      %p10 = scmp.ge.s32.totalorder %s9, 4
      %s19 = sphi 0, %s21
      %s22 = sphi 0, %s19
      %s23 = sphi 0, %s22
      %s39 = sphi 0, %s23
      %s43 = sphi 0, %s43
      %s45 = sphi 0, %s43
      %s46 = sphi 0, %s45
      %s60 = sphi 0, %s46
      %s64 = sphi 0, %s64
      %s66 = sphi 0, %s64
      %s67 = sphi 0, %s66
      %s81 = sphi 0, %s67
      %s87 = sphi 0, %s89
      %s90 = sphi 0, %s87
      %s91 = sphi 0, %s90
      %s107 = sphi 0, %s91
    $region4: #{forward.4} parent=1 // loop_header_branch
      %12 = sbr.rel (%p10) target = $region8
    $region5: #{forward.4} parent=1 // loop_body
      %s14 = ssub.s32 %s9, 1
      %s15 = ssub.s32 %s9, 2
      %s16 = sadd.s32 %s9, 1
      %s17 = ssub.s32 %s9, %s16
      %p18 = scmp.eq.s32.totalorder %s17, 0
      %s20 = sadd.s32 %s19, 1
      %s21 = scalar_select %p18, %s19, %s20
      %p24 = pneg %p18
      %p25 = scmp.eq.s32.totalorder %s9, 1
      %p26 = por %p24, %p25
      %p27 = scmp.ne.s32.totalorder %s19, %s22
      %p28 = scmp.eq.s32.totalorder %s9, 0
      %p29 = por %p27, %p28
      %p30 = scmp.ne.s32.totalorder %s19, %s22
      %p31 = scmp.eq.s32.totalorder %s14, 1
      %p32 = por %p30, %p31
      %p33 = scmp.ne.s32.totalorder %s22, %s23
      %p34 = scmp.eq.s32.totalorder %s14, 0
      %p35 = por %p33, %p34
      %p36 = scmp.ne.s32.totalorder %s22, %s23
      %p37 = scmp.eq.s32.totalorder %s15, 1
      %p38 = por %p36, %p37
      %p40 = scmp.ne.s32.totalorder %s23, %s39
      %p41 = scmp.eq.s32.totalorder %s15, 0
      %p42 = por %p40, %p41
      %s44 = sadd.s32 %s43, 1
      %p47 = scmp.eq.s32.totalorder %s9, 1
      %p48 = scmp.ne.s32.totalorder %s43, %s45
      %p49 = scmp.eq.s32.totalorder %s9, 0
      %p50 = por %p48, %p49
      %p51 = scmp.ne.s32.totalorder %s43, %s45
      %p52 = scmp.eq.s32.totalorder %s14, 1
      %p53 = por %p51, %p52
      %p54 = scmp.ne.s32.totalorder %s45, %s46
      %p55 = scmp.eq.s32.totalorder %s14, 0
      %p56 = por %p54, %p55
      %p57 = scmp.ne.s32.totalorder %s45, %s46
      %p58 = scmp.eq.s32.totalorder %s15, 1
      %p59 = por %p57, %p58
      %p61 = scmp.ne.s32.totalorder %s46, %s60
      %p62 = scmp.eq.s32.totalorder %s15, 0
      %p63 = por %p61, %p62
      %s65 = sadd.s32 %s64, 1
      %p68 = scmp.eq.s32.totalorder %s9, 1
      %p69 = scmp.ne.s32.totalorder %s64, %s66
      %p70 = scmp.eq.s32.totalorder %s9, 0
      %p71 = por %p69, %p70
      %p72 = scmp.ne.s32.totalorder %s64, %s66
      %p73 = scmp.eq.s32.totalorder %s14, 1
      %p74 = por %p72, %p73
      %p75 = scmp.ne.s32.totalorder %s66, %s67
      %p76 = scmp.eq.s32.totalorder %s14, 0
      %p77 = por %p75, %p76
      %p78 = scmp.ne.s32.totalorder %s66, %s67
      %p79 = scmp.eq.s32.totalorder %s15, 1
      %p80 = por %p78, %p79
      %p82 = scmp.ne.s32.totalorder %s67, %s81
      %p83 = scmp.eq.s32.totalorder %s15, 0
      %p84 = por %p82, %p83
      %s85 = ssub.s32 %s9, %s16
      %p86 = scmp.eq.s32.totalorder %s85, 0
      %s88 = sadd.s32 %s87, 1
      %s89 = scalar_select %p86, %s87, %s88
      %p92 = pneg %p86
      %p93 = scmp.eq.s32.totalorder %s9, 1
      %p94 = por %p92, %p93
      %p95 = scmp.ne.s32.totalorder %s87, %s90
      %p96 = scmp.eq.s32.totalorder %s9, 0
      %p97 = por %p95, %p96
      %p98 = scmp.ne.s32.totalorder %s87, %s90
      %p99 = scmp.eq.s32.totalorder %s14, 1
      %p100 = por %p98, %p99
      %p101 = scmp.ne.s32.totalorder %s90, %s91
      %p102 = scmp.eq.s32.totalorder %s14, 0
      %p103 = por %p101, %p102
      %p104 = scmp.ne.s32.totalorder %s90, %s91
      %p105 = scmp.eq.s32.totalorder %s15, 1
      %p106 = por %p104, %p105
      %p108 = scmp.ne.s32.totalorder %s91, %s107
      %p109 = scmp.eq.s32.totalorder %s15, 0
      %p110 = por %p108, %p109
      %p111 = scmp.le.s32.totalorder 1, %s9
      %p112 = scmp.lt.s32.totalorder %s9, 3
      %p113 = pnand %p111, %p112
      %p114 = pneg %p113
      // Predicated region
      $region9: #{forward.4} parent=5 // pred_check
        _
      $region10: #{forward.4} parent=5 // pred_check_branch
        %116 = sbr.rel (%p113) target = $region12
      $region11: #{forward.4} parent=5 // pred_region
        %s117 = ssub.s32 %s9, 1
        // Predicated region
        $region13: #{forward.4} parent=11 // pred_check
          %p118 = pneg %p56
        $region14: #{forward.4} parent=11 // pred_check_branch
          %120 = sbr.rel (%p118) target = $region16
        $region15: #{forward.4} parent=11 // pred_region
          _
        $region16: #{forward.4} parent=11 // pred_fallthru
          _
        // Predicated region
        $region17: #{forward.4} parent=11 // pred_check
          %p121 = pneg %p77
        $region18: #{forward.4} parent=11 // pred_check_branch
          %123 = sbr.rel (%p121) target = $region20
        $region19: #{forward.4} parent=11 // pred_region
          _
        $region20: #{forward.4} parent=11 // pred_fallthru
          _
      $region12: #{forward.4} parent=5 // pred_fallthru
        _
      %p124 = scmp.lt.s32.totalorder %s9, 2
      // Predicated region
      $region21: #{forward.4} parent=5 // pred_check
        %p125 = pneg %p124
      $region22: #{forward.4} parent=5 // pred_check_branch
        %127 = sbr.rel (%p125) target = $region24
      $region23: #{forward.4} parent=5 // pred_region
        // Predicated region
        $region25: #{forward.4} parent=23 // pred_check
          %p128 = pneg %p29
        $region26: #{forward.4} parent=23 // pred_check_branch
          %130 = sbr.rel (%p128) target = $region28
        $region27: #{forward.4} parent=23 // pred_region
          %s131 = sand.u32 %s19, 1
          %s132 = sand.u32 %s19, 1
          %s133 = smul.addr %s132, 128
          %s134 = scalar_lea.vmem [#allocation2], %s133
          %s135 = smul.u32 8, %s9
          %s136 = smul.addr %s135, 4
          %s137 = scalar_lea.vmem %s0, %s136
          // Predicated region
          $region29: #{forward.4} parent=27 // pred_check
            _
          $region30: #{forward.4} parent=27 // pred_check_branch
            %139 = sbr.rel (0) target = $region32
          $region31: #{forward.4} parent=27 // pred_region
            // Predicated region
            $region33: #{forward.4} parent=31 // pred_check
              _
            $region34: #{forward.4} parent=31 // pred_check_branch
              %141 = sbr.rel target = $region36
            $region35: #{forward.4} parent=31 // pred_region
              // Predicated region
              $region48: #{forward.4} parent=35 // pred_check
                _
              $region49: #{forward.4} parent=35 // pred_check_branch
                %218 = sbr.rel (0) target = $region51
              $region50: #{forward.4} parent=35 // pred_region
                loop: start=0, step=1, limit=1
                $region52: #{forward.4} parent=50 // loop_pre_header
                  _
                $region53: #{forward.4} parent=50 // loop_header
                  %s220 = sphi 0, %s224
                  %p221 = scmp.ge.s32.totalorder %s220, 1
                  %s225 = sphi %s137, %s137
                  %s226 = sphi %s134, %s134
                $region54: #{forward.4} parent=50 // loop_header_branch
                  %223 = sbr.rel (%p221) target = $region58
                $region55: #{forward.4} parent=50 // loop_body
                  _
                $region56: #{forward.4} parent=50 // loop_footer
                  %s224 = sadd.s32 1, %s220
                $region57: #{forward.4} parent=50 // loop_footer_branch
                  %219 = sbr.rel target = $region53
                $region58: #{forward.4} parent=50 // loop_exit
                  _
                loop: start=0, step=1, limit=1
                $region59: #{forward.4} parent=50 // loop_pre_header
                  _
                $region60: #{forward.4} parent=50 // loop_header
                  %s229 = sphi 0, %s233
                  %p230 = scmp.ge.s32.totalorder %s229, 1
                  %s234 = sphi %s137, %s137
                  %s235 = sphi %s134, %s134
                $region61: #{forward.4} parent=50 // loop_header_branch
                  %232 = sbr.rel (%p230) target = $region65
                $region62: #{forward.4} parent=50 // loop_body
                  %v236 = vld [vmem:[%s234] sm:$0xf]
                  %237 = vst [vmem:[%s235] sm:$0xf] %v236
                  %v238 = vld [vmem:[%s234 + $0x4] sm:$0xf]
                  %239 = vst [vmem:[%s235 + $0x4] sm:$0xf] %v238
                  %v240 = vld [vmem:[%s234 + $0x8] sm:$0xf]
                  %241 = vst [vmem:[%s235 + $0x8] sm:$0xf] %v240
                  %v242 = vld [vmem:[%s234 + $0xc] sm:$0xf]
                  %243 = vst [vmem:[%s235 + $0xc] sm:$0xf] %v242
                  %v244 = vld [vmem:[%s234 + $0x10] sm:$0xf]
                  %245 = vst [vmem:[%s235 + $0x10] sm:$0xf] %v244
                  %v246 = vld [vmem:[%s234 + $0x14] sm:$0xf]
                  %247 = vst [vmem:[%s235 + $0x14] sm:$0xf] %v246
                  %v248 = vld [vmem:[%s234 + $0x18] sm:$0xf]
                  %249 = vst [vmem:[%s235 + $0x18] sm:$0xf] %v248
                  %v250 = vld [vmem:[%s234 + $0x1c] sm:$0xf]
                  %251 = vst [vmem:[%s235 + $0x1c] sm:$0xf] %v250
                  %v252 = vld [vmem:[%s234 + $0x40] sm:$0xf]
                  %253 = vst [vmem:[%s235 + $0x20] sm:$0xf] %v252
                  %v254 = vld [vmem:[%s234 + $0x44] sm:$0xf]
                  %255 = vst [vmem:[%s235 + $0x24] sm:$0xf] %v254
                  %v256 = vld [vmem:[%s234 + $0x48] sm:$0xf]
                  %257 = vst [vmem:[%s235 + $0x28] sm:$0xf] %v256
                  %v258 = vld [vmem:[%s234 + $0x4c] sm:$0xf]
                  %259 = vst [vmem:[%s235 + $0x2c] sm:$0xf] %v258
                  %v260 = vld [vmem:[%s234 + $0x50] sm:$0xf]
                  %261 = vst [vmem:[%s235 + $0x30] sm:$0xf] %v260
                  %v262 = vld [vmem:[%s234 + $0x54] sm:$0xf]
                  %263 = vst [vmem:[%s235 + $0x34] sm:$0xf] %v262
                  %v264 = vld [vmem:[%s234 + $0x58] sm:$0xf]
                  %265 = vst [vmem:[%s235 + $0x38] sm:$0xf] %v264
                  %v266 = vld [vmem:[%s234 + $0x5c] sm:$0xf]
                  %267 = vst [vmem:[%s235 + $0x3c] sm:$0xf] %v266
                  %v268 = vld [vmem:[%s234 + $0x80] sm:$0xf]
                  %269 = vst [vmem:[%s235 + $0x40] sm:$0xf] %v268
                  %v270 = vld [vmem:[%s234 + $0x84] sm:$0xf]
                  %271 = vst [vmem:[%s235 + $0x44] sm:$0xf] %v270
                  %v272 = vld [vmem:[%s234 + $0x88] sm:$0xf]
                  %273 = vst [vmem:[%s235 + $0x48] sm:$0xf] %v272
                  %v274 = vld [vmem:[%s234 + $0x8c] sm:$0xf]
                  %275 = vst [vmem:[%s235 + $0x4c] sm:$0xf] %v274
                  %v276 = vld [vmem:[%s234 + $0x90] sm:$0xf]
                  %277 = vst [vmem:[%s235 + $0x50] sm:$0xf] %v276
                  %v278 = vld [vmem:[%s234 + $0x94] sm:$0xf]
                  %279 = vst [vmem:[%s235 + $0x54] sm:$0xf] %v278
                  %v280 = vld [vmem:[%s234 + $0x98] sm:$0xf]
                  %281 = vst [vmem:[%s235 + $0x58] sm:$0xf] %v280
                  %v282 = vld [vmem:[%s234 + $0x9c] sm:$0xf]
                  %283 = vst [vmem:[%s235 + $0x5c] sm:$0xf] %v282
                  %v284 = vld [vmem:[%s234 + $0xc0] sm:$0xf]
                  %285 = vst [vmem:[%s235 + $0x60] sm:$0xf] %v284
                  %v286 = vld [vmem:[%s234 + $0xc4] sm:$0xf]
                  %287 = vst [vmem:[%s235 + $0x64] sm:$0xf] %v286
                  %v288 = vld [vmem:[%s234 + $0xc8] sm:$0xf]
                  %289 = vst [vmem:[%s235 + $0x68] sm:$0xf] %v288
                  %v290 = vld [vmem:[%s234 + $0xcc] sm:$0xf]
                  %291 = vst [vmem:[%s235 + $0x6c] sm:$0xf] %v290
                  %v292 = vld [vmem:[%s234 + $0xd0] sm:$0xf]
                  %293 = vst [vmem:[%s235 + $0x70] sm:$0xf] %v292
                  %v294 = vld [vmem:[%s234 + $0xd4] sm:$0xf]
                  %295 = vst [vmem:[%s235 + $0x74] sm:$0xf] %v294
                  %v296 = vld [vmem:[%s234 + $0xd8] sm:$0xf]
                  %297 = vst [vmem:[%s235 + $0x78] sm:$0xf] %v296
                  %v298 = vld [vmem:[%s234 + $0xdc] sm:$0xf]
                  %299 = vst [vmem:[%s235 + $0x7c] sm:$0xf] %v298
                $region63: #{forward.4} parent=50 // loop_footer
                  %s233 = sadd.s32 1, %s229
                $region64: #{forward.4} parent=50 // loop_footer_branch
                  %228 = sbr.rel target = $region60
                $region65: #{forward.4} parent=50 // loop_exit
                  _
              $region51: #{forward.4} parent=35 // pred_fallthru
                _
            $region36: #{forward.4} parent=31 // pred_fallthru
              _
            // Predicated region
            $region37: #{forward.4} parent=31 // pred_check
              _
            $region38: #{forward.4} parent=31 // pred_check_branch
              %143 = sbr.rel (0) target = $region40
            $region39: #{forward.4} parent=31 // pred_region
              loop: start=0, step=1, limit=1
              $region41: #{forward.4} parent=39 // loop_pre_header
                _
              $region42: #{forward.4} parent=39 // loop_header
                %s146 = sphi 0, %s150
                %p147 = scmp.ge.s32.totalorder %s146, 1
                %s151 = sphi %s137, %s137
                %s152 = sphi %s134, %s134
              $region43: #{forward.4} parent=39 // loop_header_branch
                %149 = sbr.rel (%p147) target = $region47
              $region44: #{forward.4} parent=39 // loop_body
                %v153 = vld [vmem:[%s151] sm:$0xf]
                %154 = vst [vmem:[%s152] sm:$0xf] %v153
                %v155 = vld [vmem:[%s151 + $0x4] sm:$0xf]
                %156 = vst [vmem:[%s152 + $0x4] sm:$0xf] %v155
                %v157 = vld [vmem:[%s151 + $0x8] sm:$0xf]
                %158 = vst [vmem:[%s152 + $0x8] sm:$0xf] %v157
                %v159 = vld [vmem:[%s151 + $0xc] sm:$0xf]
                %160 = vst [vmem:[%s152 + $0xc] sm:$0xf] %v159
                %v161 = vld [vmem:[%s151 + $0x10] sm:$0xf]
                %162 = vst [vmem:[%s152 + $0x10] sm:$0xf] %v161
                %v163 = vld [vmem:[%s151 + $0x14] sm:$0xf]
                %164 = vst [vmem:[%s152 + $0x14] sm:$0xf] %v163
                %v165 = vld [vmem:[%s151 + $0x18] sm:$0xf]
                %166 = vst [vmem:[%s152 + $0x18] sm:$0xf] %v165
                %v167 = vld [vmem:[%s151 + $0x1c] sm:$0xf]
                %168 = vst [vmem:[%s152 + $0x1c] sm:$0xf] %v167
                %v169 = vld [vmem:[%s151 + $0x40] sm:$0xf]
                %170 = vst [vmem:[%s152 + $0x20] sm:$0xf] %v169
                %v171 = vld [vmem:[%s151 + $0x44] sm:$0xf]
                %172 = vst [vmem:[%s152 + $0x24] sm:$0xf] %v171
                %v173 = vld [vmem:[%s151 + $0x48] sm:$0xf]
                %174 = vst [vmem:[%s152 + $0x28] sm:$0xf] %v173
                %v175 = vld [vmem:[%s151 + $0x4c] sm:$0xf]
                %176 = vst [vmem:[%s152 + $0x2c] sm:$0xf] %v175
                %v177 = vld [vmem:[%s151 + $0x50] sm:$0xf]
                %178 = vst [vmem:[%s152 + $0x30] sm:$0xf] %v177
                %v179 = vld [vmem:[%s151 + $0x54] sm:$0xf]
                %180 = vst [vmem:[%s152 + $0x34] sm:$0xf] %v179
                %v181 = vld [vmem:[%s151 + $0x58] sm:$0xf]
                %182 = vst [vmem:[%s152 + $0x38] sm:$0xf] %v181
                %v183 = vld [vmem:[%s151 + $0x5c] sm:$0xf]
                %184 = vst [vmem:[%s152 + $0x3c] sm:$0xf] %v183
                %v185 = vld [vmem:[%s151 + $0x80] sm:$0xf]
                %186 = vst [vmem:[%s152 + $0x40] sm:$0xf] %v185
                %v187 = vld [vmem:[%s151 + $0x84] sm:$0xf]
                %188 = vst [vmem:[%s152 + $0x44] sm:$0xf] %v187
                %v189 = vld [vmem:[%s151 + $0x88] sm:$0xf]
                %190 = vst [vmem:[%s152 + $0x48] sm:$0xf] %v189
                %v191 = vld [vmem:[%s151 + $0x8c] sm:$0xf]
                %192 = vst [vmem:[%s152 + $0x4c] sm:$0xf] %v191
                %v193 = vld [vmem:[%s151 + $0x90] sm:$0xf]
                %194 = vst [vmem:[%s152 + $0x50] sm:$0xf] %v193
                %v195 = vld [vmem:[%s151 + $0x94] sm:$0xf]
                %196 = vst [vmem:[%s152 + $0x54] sm:$0xf] %v195
                %v197 = vld [vmem:[%s151 + $0x98] sm:$0xf]
                %198 = vst [vmem:[%s152 + $0x58] sm:$0xf] %v197
                %v199 = vld [vmem:[%s151 + $0x9c] sm:$0xf]
                %200 = vst [vmem:[%s152 + $0x5c] sm:$0xf] %v199
                %v201 = vld [vmem:[%s151 + $0xc0] sm:$0xf]
                %202 = vst [vmem:[%s152 + $0x60] sm:$0xf] %v201
                %v203 = vld [vmem:[%s151 + $0xc4] sm:$0xf]
                %204 = vst [vmem:[%s152 + $0x64] sm:$0xf] %v203
                %v205 = vld [vmem:[%s151 + $0xc8] sm:$0xf]
                %206 = vst [vmem:[%s152 + $0x68] sm:$0xf] %v205
                %v207 = vld [vmem:[%s151 + $0xcc] sm:$0xf]
                %208 = vst [vmem:[%s152 + $0x6c] sm:$0xf] %v207
                %v209 = vld [vmem:[%s151 + $0xd0] sm:$0xf]
                %210 = vst [vmem:[%s152 + $0x70] sm:$0xf] %v209
                %v211 = vld [vmem:[%s151 + $0xd4] sm:$0xf]
                %212 = vst [vmem:[%s152 + $0x74] sm:$0xf] %v211
                %v213 = vld [vmem:[%s151 + $0xd8] sm:$0xf]
                %214 = vst [vmem:[%s152 + $0x78] sm:$0xf] %v213
                %v215 = vld [vmem:[%s151 + $0xdc] sm:$0xf]
                %216 = vst [vmem:[%s152 + $0x7c] sm:$0xf] %v215
              $region45: #{forward.4} parent=39 // loop_footer
                %s150 = sadd.s32 1, %s146
              $region46: #{forward.4} parent=39 // loop_footer_branch
                %145 = sbr.rel target = $region42
              $region47: #{forward.4} parent=39 // loop_exit
                _
            $region40: #{forward.4} parent=31 // pred_fallthru
              _
          $region32: #{forward.4} parent=27 // pred_fallthru
            _
          %300 = vnop
        $region28: #{forward.4} parent=23 // pred_fallthru
          _
      $region24: #{forward.4} parent=5 // pred_fallthru
        _
      %p301 = scmp.le.s32.totalorder 1, %s9
      %p302 = scmp.lt.s32.totalorder %s9, 3
      %p303 = pnand %p301, %p302
      %p304 = pneg %p303
      // Predicated region
      $region66: #{forward.4} parent=5 // pred_check
        _
      $region67: #{forward.4} parent=5 // pred_check_branch
        %306 = sbr.rel (%p303) target = $region69
      $region68: #{forward.4} parent=5 // pred_region
        %s307 = ssub.s32 %s9, 1
        %s308 = sand.u32 %s22, 1
        %s309 = sand.u32 %s22, 1
        %s310 = smul.addr %s309, 128
        %s311 = scalar_lea.vmem [#allocation2], %s310
        // Predicated region
        $region70: #{forward.4} parent=68 // pred_check
          %p312 = pneg %p35
        $region71: #{forward.4} parent=68 // pred_check_branch
          %314 = sbr.rel (%p312) target = $region73
        $region72: #{forward.4} parent=68 // pred_region
          _
        $region73: #{forward.4} parent=68 // pred_fallthru
          _
        %s315 = sand.u32 %s22, 1
        %s316 = sand.u32 %s22, 1
        %s317 = smul.addr %s316, 128
        %s318 = scalar_lea.vmem [#allocation2], %s317
        %p319 = pneg %p35
        %p320 = pneg %p32
        %p321 = pneg %p56
        %p322 = pneg %p53
        %p323 = pneg %p77
        %p324 = pneg %p74
        %p325 = pneg %p103
        %p326 = pneg %p100
        %s327 = smul.u32 8, %s14
        %p328 = scmp.lt.s32.totalorder %s327, 15
        %s329 = scalar_select %p328, %s327, 15
        %s330 = smul.addr %s329, 4
        %s331 = scalar_lea.vmem %s3, %s330
        %s332 = smul.u32 8, %s14
        %s333 = smul.u32 8, %s14
        %p334 = scmp.lt.s32.totalorder %s333, 15
        %s335 = scalar_select %p334, %s333, 15
        %s336 = smul.addr %s335, 4
        %s337 = scalar_lea.vmem %s3, %s336
        %s338 = smul.u32 8, %s14
        %v340 = vld [vmem:[%s311] sm:$0xf]
        %v341 = vld [vmem:[%s311 + $0x4] sm:$0xf]
        %v342 = vld [vmem:[%s311 + $0x8] sm:$0xf]
        %v343 = vld [vmem:[%s311 + $0xc] sm:$0xf]
        %v344 = vld [vmem:[%s311 + $0x10] sm:$0xf]
        %v345 = vld [vmem:[%s311 + $0x14] sm:$0xf]
        %v346 = vld [vmem:[%s311 + $0x18] sm:$0xf]
        %v347 = vld [vmem:[%s311 + $0x1c] sm:$0xf]
        %v348 = vld [vmem:[%s311 + $0x20] sm:$0xf]
        %v349 = vld [vmem:[%s311 + $0x24] sm:$0xf]
        %v350 = vld [vmem:[%s311 + $0x28] sm:$0xf]
        %v351 = vld [vmem:[%s311 + $0x2c] sm:$0xf]
        %v352 = vld [vmem:[%s311 + $0x30] sm:$0xf]
        %v353 = vld [vmem:[%s311 + $0x34] sm:$0xf]
        %v354 = vld [vmem:[%s311 + $0x38] sm:$0xf]
        %v355 = vld [vmem:[%s311 + $0x3c] sm:$0xf]
        %v356 = vld [vmem:[%s311 + $0x40] sm:$0xf]
        %v357 = vld [vmem:[%s311 + $0x44] sm:$0xf]
        %v358 = vld [vmem:[%s311 + $0x48] sm:$0xf]
        %v359 = vld [vmem:[%s311 + $0x4c] sm:$0xf]
        %v360 = vld [vmem:[%s311 + $0x50] sm:$0xf]
        %v361 = vld [vmem:[%s311 + $0x54] sm:$0xf]
        %v362 = vld [vmem:[%s311 + $0x58] sm:$0xf]
        %v363 = vld [vmem:[%s311 + $0x5c] sm:$0xf]
        %v364 = vld [vmem:[%s311 + $0x60] sm:$0xf]
        %v365 = vld [vmem:[%s311 + $0x64] sm:$0xf]
        %v366 = vld [vmem:[%s311 + $0x68] sm:$0xf]
        %v367 = vld [vmem:[%s311 + $0x6c] sm:$0xf]
        %v368 = vld [vmem:[%s311 + $0x70] sm:$0xf]
        %v369 = vld [vmem:[%s311 + $0x74] sm:$0xf]
        %v370 = vld [vmem:[%s311 + $0x78] sm:$0xf]
        %v371 = vld [vmem:[%s311 + $0x7c] sm:$0xf]
        %v372 = vld [vmem:[%s1] sm:$0xf]
        %v373 = vld [vmem:[%s1 + $0x4] sm:$0xf]
        %v374 = vld [vmem:[%s1 + $0x8] sm:$0xf]
        %v375 = vld [vmem:[%s1 + $0xc] sm:$0xf]
        %v376 = vld [vmem:[%s1 + $0x10] sm:$0xf]
        %v377 = vld [vmem:[%s1 + $0x14] sm:$0xf]
        %v378 = vld [vmem:[%s1 + $0x18] sm:$0xf]
        %v379 = vld [vmem:[%s1 + $0x1c] sm:$0xf]
        %v380 = vld [vmem:[%s1 + $0x20] sm:$0xf]
        %v381 = vld [vmem:[%s1 + $0x24] sm:$0xf]
        %v382 = vld [vmem:[%s1 + $0x28] sm:$0xf]
        %v383 = vld [vmem:[%s1 + $0x2c] sm:$0xf]
        %v384 = vld [vmem:[%s1 + $0x30] sm:$0xf]
        %v385 = vld [vmem:[%s1 + $0x34] sm:$0xf]
        %v386 = vld [vmem:[%s1 + $0x38] sm:$0xf]
        %v387 = vld [vmem:[%s1 + $0x3c] sm:$0xf]
        %v420 = vunpack.c.l.b16 %v340
        %v421 = vunpack.c.l.b16 %v341
        %v422 = vunpack.c.l.b16 %v342
        %v423 = vunpack.c.l.b16 %v343
        %v424 = vunpack.c.l.b16 %v344
        %v425 = vunpack.c.l.b16 %v345
        %v426 = vunpack.c.l.b16 %v346
        %v427 = vunpack.c.l.b16 %v347
        %v428 = vunpack.c.l.b16 %v348
        %v429 = vunpack.c.l.b16 %v349
        %v430 = vunpack.c.l.b16 %v350
        %v431 = vunpack.c.l.b16 %v351
        %v432 = vunpack.c.l.b16 %v352
        %v433 = vunpack.c.l.b16 %v353
        %v434 = vunpack.c.l.b16 %v354
        %v435 = vunpack.c.l.b16 %v355
        %v436 = vunpack.c.l.b16 %v356
        %v437 = vunpack.c.l.b16 %v357
        %v438 = vunpack.c.l.b16 %v358
        %v439 = vunpack.c.l.b16 %v359
        %v440 = vunpack.c.l.b16 %v360
        %v441 = vunpack.c.l.b16 %v361
        %v442 = vunpack.c.l.b16 %v362
        %v443 = vunpack.c.l.b16 %v363
        %v444 = vunpack.c.l.b16 %v364
        %v445 = vunpack.c.l.b16 %v365
        %v446 = vunpack.c.l.b16 %v366
        %v447 = vunpack.c.l.b16 %v367
        %v448 = vunpack.c.l.b16 %v368
        %v449 = vunpack.c.l.b16 %v369
        %v450 = vunpack.c.l.b16 %v370
        %v451 = vunpack.c.l.b16 %v371
        %v452 = vpack.c.b16 %v421, %v420
        %v453 = vpack.c.b16 %v423, %v422
        %v454 = vpack.c.b16 %v425, %v424
        %v455 = vpack.c.b16 %v427, %v426
        %v456 = vpack.c.b16 %v429, %v428
        %v457 = vpack.c.b16 %v431, %v430
        %v458 = vpack.c.b16 %v433, %v432
        %v459 = vpack.c.b16 %v435, %v434
        %v460 = vpack.c.b16 %v437, %v436
        %v461 = vpack.c.b16 %v439, %v438
        %v462 = vpack.c.b16 %v441, %v440
        %v463 = vpack.c.b16 %v443, %v442
        %v464 = vpack.c.b16 %v445, %v444
        %v465 = vpack.c.b16 %v447, %v446
        %v466 = vpack.c.b16 %v449, %v448
        %v467 = vpack.c.b16 %v451, %v450
        %v500 = vunpack.c.l.b16 %v372
        %v501 = vunpack.c.l.b16 %v373
        %v502 = vunpack.c.l.b16 %v374
        %v503 = vunpack.c.l.b16 %v375
        %v504 = vunpack.c.l.b16 %v376
        %v505 = vunpack.c.l.b16 %v377
        %v506 = vunpack.c.l.b16 %v378
        %v507 = vunpack.c.l.b16 %v379
        %v508 = vunpack.c.l.b16 %v380
        %v509 = vunpack.c.l.b16 %v381
        %v510 = vunpack.c.l.b16 %v382
        %v511 = vunpack.c.l.b16 %v383
        %v512 = vunpack.c.l.b16 %v384
        %v513 = vunpack.c.l.b16 %v385
        %v514 = vunpack.c.l.b16 %v386
        %v515 = vunpack.c.l.b16 %v387
        %v516 = vpack.c.b16 %v501, %v500
        %v517 = vpack.c.b16 %v503, %v502
        %v518 = vpack.c.b16 %v505, %v504
        %v519 = vpack.c.b16 %v507, %v506
        %v520 = vpack.c.b16 %v509, %v508
        %v521 = vpack.c.b16 %v511, %v510
        %v522 = vpack.c.b16 %v513, %v512
        %v523 = vpack.c.b16 %v515, %v514
        %532 = vmatprep.subr.bf16.mxu0 0
        %533 = vmatpush1.bf16.msra.mxu0 %v516
        %534 = vmatprep.subr.bf16.mxu0 0
        %535 = vmatpush1.bf16.msra.mxu0 %v517
        %536 = vmatprep.subr.bf16.mxu0 0
        %537 = vmatpush1.bf16.msra.mxu0 %v518
        %538 = vmatprep.subr.bf16.mxu0 0
        %539 = vmatpush1.bf16.msra.mxu0 %v519
        %540 = vmatprep.subr.bf16.mxu0 0
        %541 = vmatpush1.bf16.msra.mxu0 %v520
        %542 = vmatprep.subr.bf16.mxu0 0
        %543 = vmatpush1.bf16.msra.mxu0 %v521
        %544 = vmatprep.subr.bf16.mxu0 0
        %545 = vmatpush1.bf16.msra.mxu0 %v522
        %546 = vmatprep.subr.bf16.mxu0 0
        %547 = vmatpush1.bf16.msra.mxu0 %v523
        %548 = vmatprep.subr.bf16.mxu0 0
        %549 = vmatpush1.bf16.msra.mxu0 0
        %550 = vmatprep.subr.bf16.mxu0 0
        %551 = vmatpush1.bf16.msra.mxu0 0
        %552 = vmatprep.subr.bf16.mxu0 0
        %553 = vmatpush1.bf16.msra.mxu0 0
        %554 = vmatprep.subr.bf16.mxu0 0
        %555 = vmatpush1.bf16.msra.mxu0 0
        %556 = vmatprep.subr.bf16.mxu0 0
        %557 = vmatpush1.bf16.msra.mxu0 0
        %558 = vmatprep.subr.bf16.mxu0 0
        %559 = vmatpush1.bf16.msra.mxu0 0
        %560 = vmatprep.subr.bf16.mxu0 0
        %561 = vmatpush1.bf16.msra.mxu0 0
        %562 = vmatprep.subr.bf16.mxu0 0
        %563 = vmatpush1.bf16.msra.mxu0 0
        %564 = vmatprep.mubr.bf16.mxu0 0
        %565 = vmatmul.mubr.bf16.gmra.mrb[0].mxu0 %v452
        %v566 = vpop.f32.mrb[0].mxu0
        %v567 = vadd.f32 0.0, %v566
        %v568 = vpop.f32.mrb[0].mxu0
        %v569 = vpop.f32.mrb[0].mxu0
        %v570 = vadd.f32 0.0, %v569
        %v571 = vpop.f32.mrb[0].mxu0
        %572 = vmatprep.mubr.bf16.mxu0 0
        %573 = vmatmul.mubr.bf16.gmra.mrb[0].mxu0 %v453
        %v574 = vpop.f32.mrb[0].mxu0
        %v575 = vadd.f32 0.0, %v574
        %v576 = vpop.f32.mrb[0].mxu0
        %v577 = vpop.f32.mrb[0].mxu0
        %v578 = vadd.f32 0.0, %v577
        %v579 = vpop.f32.mrb[0].mxu0
        %580 = vmatprep.mubr.bf16.mxu0 0
        %581 = vmatmul.mubr.bf16.gmra.mrb[0].mxu0 %v454
        %v582 = vpop.f32.mrb[0].mxu0
        %v583 = vadd.f32 0.0, %v582
        %v584 = vpop.f32.mrb[0].mxu0
        %v585 = vpop.f32.mrb[0].mxu0
        %v586 = vadd.f32 0.0, %v585
        %v587 = vpop.f32.mrb[0].mxu0
        %588 = vmatprep.mubr.bf16.mxu0 0
        %589 = vmatmul.mubr.bf16.gmra.mrb[0].mxu0 %v455
        %v590 = vpop.f32.mrb[0].mxu0
        %v591 = vadd.f32 0.0, %v590
        %v592 = vpop.f32.mrb[0].mxu0
        %v593 = vpop.f32.mrb[0].mxu0
        %v594 = vadd.f32 0.0, %v593
        %v595 = vpop.f32.mrb[0].mxu0
        %596 = vmatprep.mubr.bf16.mxu0 0
        %597 = vmatmul.mubr.bf16.gmra.mrb[0].mxu0 %v456
        %v598 = vpop.f32.mrb[0].mxu0
        %v599 = vadd.f32 0.0, %v598
        %v600 = vpop.f32.mrb[0].mxu0
        %v601 = vpop.f32.mrb[0].mxu0
        %v602 = vadd.f32 0.0, %v601
        %v603 = vpop.f32.mrb[0].mxu0
        %604 = vmatprep.mubr.bf16.mxu0 0
        %605 = vmatmul.mubr.bf16.gmra.mrb[0].mxu0 %v457
        %v606 = vpop.f32.mrb[0].mxu0
        %v607 = vadd.f32 0.0, %v606
        %v608 = vpop.f32.mrb[0].mxu0
        %v609 = vpop.f32.mrb[0].mxu0
        %v610 = vadd.f32 0.0, %v609
        %v611 = vpop.f32.mrb[0].mxu0
        %612 = vmatprep.mubr.bf16.mxu0 0
        %613 = vmatmul.mubr.bf16.gmra.mrb[0].mxu0 %v458
        %v614 = vpop.f32.mrb[0].mxu0
        %v615 = vadd.f32 0.0, %v614
        %v616 = vpop.f32.mrb[0].mxu0
        %v617 = vpop.f32.mrb[0].mxu0
        %v618 = vadd.f32 0.0, %v617
        %v619 = vpop.f32.mrb[0].mxu0
        %620 = vmatprep.mubr.bf16.mxu0 0
        %621 = vmatmul.mubr.bf16.gmra.mrb[0].mxu0 %v459
        %v622 = vpop.f32.mrb[0].mxu0
        %v623 = vadd.f32 0.0, %v622
        %v624 = vpop.f32.mrb[0].mxu0
        %v625 = vpop.f32.mrb[0].mxu0
        %v626 = vadd.f32 0.0, %v625
        %v627 = vpop.f32.mrb[0].mxu0
        %628 = vmatprep.mubr.bf16.mxu0 0
        %629 = vmatmul.mubr.bf16.gmra.mrb[0].mxu0 %v460
        %v630 = vpop.f32.mrb[0].mxu0
        %v631 = vadd.f32 0.0, %v630
        %v632 = vpop.f32.mrb[0].mxu0
        %v633 = vpop.f32.mrb[0].mxu0
        %v634 = vadd.f32 0.0, %v633
        %v635 = vpop.f32.mrb[0].mxu0
        %636 = vmatprep.mubr.bf16.mxu0 0
        %637 = vmatmul.mubr.bf16.gmra.mrb[0].mxu0 %v461
        %v638 = vpop.f32.mrb[0].mxu0
        %v639 = vadd.f32 0.0, %v638
        %v640 = vpop.f32.mrb[0].mxu0
        %v641 = vpop.f32.mrb[0].mxu0
        %v642 = vadd.f32 0.0, %v641
        %v643 = vpop.f32.mrb[0].mxu0
        %644 = vmatprep.mubr.bf16.mxu0 0
        %645 = vmatmul.mubr.bf16.gmra.mrb[0].mxu0 %v462
        %v646 = vpop.f32.mrb[0].mxu0
        %v647 = vadd.f32 0.0, %v646
        %v648 = vpop.f32.mrb[0].mxu0
        %v649 = vpop.f32.mrb[0].mxu0
        %v650 = vadd.f32 0.0, %v649
        %v651 = vpop.f32.mrb[0].mxu0
        %652 = vmatprep.mubr.bf16.mxu0 0
        %653 = vmatmul.mubr.bf16.gmra.mrb[0].mxu0 %v463
        %v654 = vpop.f32.mrb[0].mxu0
        %v655 = vadd.f32 0.0, %v654
        %v656 = vpop.f32.mrb[0].mxu0
        %v657 = vpop.f32.mrb[0].mxu0
        %v658 = vadd.f32 0.0, %v657
        %v659 = vpop.f32.mrb[0].mxu0
        %660 = vmatprep.mubr.bf16.mxu0 0
        %661 = vmatmul.mubr.bf16.gmra.mrb[0].mxu0 %v464
        %v662 = vpop.f32.mrb[0].mxu0
        %v663 = vadd.f32 0.0, %v662
        %v664 = vpop.f32.mrb[0].mxu0
        %v665 = vpop.f32.mrb[0].mxu0
        %v666 = vadd.f32 0.0, %v665
        %v667 = vpop.f32.mrb[0].mxu0
        %668 = vmatprep.mubr.bf16.mxu0 0
        %669 = vmatmul.mubr.bf16.gmra.mrb[0].mxu0 %v465
        %v670 = vpop.f32.mrb[0].mxu0
        %v671 = vadd.f32 0.0, %v670
        %v672 = vpop.f32.mrb[0].mxu0
        %v673 = vpop.f32.mrb[0].mxu0
        %v674 = vadd.f32 0.0, %v673
        %v675 = vpop.f32.mrb[0].mxu0
        %676 = vmatprep.mubr.bf16.mxu0 0
        %677 = vmatmul.mubr.bf16.gmra.mrb[0].mxu0 %v466
        %v678 = vpop.f32.mrb[0].mxu0
        %v679 = vadd.f32 0.0, %v678
        %v680 = vpop.f32.mrb[0].mxu0
        %v681 = vpop.f32.mrb[0].mxu0
        %v682 = vadd.f32 0.0, %v681
        %v683 = vpop.f32.mrb[0].mxu0
        %684 = vmatprep.mubr.bf16.mxu0 0
        %685 = vmatmul.mubr.bf16.gmra.mrb[0].mxu0 %v467
        %v686 = vpop.f32.mrb[0].mxu0
        %v687 = vadd.f32 0.0, %v686
        %v688 = vpop.f32.mrb[0].mxu0
        %v689 = vpop.f32.mrb[0].mxu0
        %v690 = vadd.f32 0.0, %v689
        %v691 = vpop.f32.mrb[0].mxu0
        %692 = vdwg.mxu0
        %v693 = vmax.f32 %v567, %v599
        %v694 = vmax.f32 %v693, %v631
        %v695 = vmax.f32 %v694, %v663
        %v696 = vmax.f32 %v570, %v602
        %v697 = vmax.f32 %v696, %v634
        %v698 = vmax.f32 %v697, %v666
        %v699 = vmax.f32 %v575, %v607
        %v700 = vmax.f32 %v699, %v639
        %v701 = vmax.f32 %v700, %v671
        %v702 = vmax.f32 %v578, %v610
        %v703 = vmax.f32 %v702, %v642
        %v704 = vmax.f32 %v703, %v674
        %v705 = vmax.f32 %v583, %v615
        %v706 = vmax.f32 %v705, %v647
        %v707 = vmax.f32 %v706, %v679
        %v708 = vmax.f32 %v586, %v618
        %v709 = vmax.f32 %v708, %v650
        %v710 = vmax.f32 %v709, %v682
        %v711 = vmax.f32 %v591, %v623
        %v712 = vmax.f32 %v711, %v655
        %v713 = vmax.f32 %v712, %v687
        %v714 = vmax.f32 %v594, %v626
        %v715 = vmax.f32 %v714, %v658
        %v716 = vmax.f32 %v715, %v690
        %v717 = vld [vmem:[%s2] sm:$0x1]
        %v719 = vlaneseq
        %v720 = vshrl.u32 %v719, 7
        %v721 = vsub.s32 0, %v720
        %v722 = vrot.slane %v717, %v721
        %v724 = vadd.f32 %v695, %v722
        %v725 = vadd.f32 %v698, %v722
        %v726 = vadd.f32 %v701, %v722
        %v727 = vadd.f32 %v704, %v722
        %v728 = vadd.f32 %v707, %v722
        %v729 = vadd.f32 %v710, %v722
        %v730 = vadd.f32 %v713, %v722
        %v731 = vadd.f32 %v716, %v722
        %v732 = vmax.f32 %v724, 0.0
        %v733 = vmax.f32 %v725, 0.0
        %v734 = vmax.f32 %v726, 0.0
        %v735 = vmax.f32 %v727, 0.0
        %v736 = vmax.f32 %v728, 0.0
        %v737 = vmax.f32 %v729, 0.0
        %v738 = vmax.f32 %v730, 0.0
        %v739 = vmax.f32 %v731, 0.0
        %v740 = vpack.c.bf16 %v733, %v732
        %v741 = vpack.c.bf16 %v735, %v734
        %v742 = vpack.c.bf16 %v737, %v736
        %v743 = vpack.c.bf16 %v739, %v738
        %v748 = vunpack.c.l.b16 %v740
        %v749 = vunpack.c.h.b16 %v740
        %v750 = vunpack.c.l.b16 %v741
        %v751 = vunpack.c.h.b16 %v741
        %v752 = vunpack.c.l.b16 %v742
        %v753 = vunpack.c.h.b16 %v742
        %v754 = vunpack.c.l.b16 %v743
        %v755 = vunpack.c.h.b16 %v743
        %v756 = vpack.c.b16 %v748, %v748
        %v757 = vpack.c.b16 %v749, %v749
        %v758 = vpack.c.b16 %v750, %v750
        %v759 = vpack.c.b16 %v751, %v751
        %v760 = vpack.c.b16 %v752, %v752
        %v761 = vpack.c.b16 %v753, %v753
        %v762 = vpack.c.b16 %v754, %v754
        %v763 = vpack.c.b16 %v755, %v755
        %772 = vst [vmem:[%s337] sm:$0xf] %v756
        %773 = vst [vmem:[%s337 + $0x4] sm:$0xf] %v757
        %774 = vst [vmem:[%s337 + $0x8] sm:$0xf] %v758
        %775 = vst [vmem:[%s337 + $0xc] sm:$0xf] %v759
        %776 = vst [vmem:[%s337 + $0x10] sm:$0xf] %v760
        %777 = vst [vmem:[%s337 + $0x14] sm:$0xf] %v761
        %778 = vst [vmem:[%s337 + $0x18] sm:$0xf] %v762
        %779 = vst [vmem:[%s337 + $0x1c] sm:$0xf] %v763
        %s780 = smul.u32 8, %s14
        %p781 = scmp.lt.s32.totalorder %s780, 15
        %s782 = scalar_select %p781, %s780, 15
        %s783 = smul.addr %s782, 4
        %s784 = scalar_lea.vmem %s3, %s783
        // Predicated region
        $region74: #{forward.4} parent=68 // pred_check
          %p785 = pneg %p100
        $region75: #{forward.4} parent=68 // pred_check_branch
          %787 = sbr.rel (%p785) target = $region77
        $region76: #{forward.4} parent=68 // pred_region
          %s788 = smul.u32 8, %s14
        $region77: #{forward.4} parent=68 // pred_fallthru
          _
      $region69: #{forward.4} parent=5 // pred_fallthru
        _
      %p789 = scmp.le.s32.totalorder 2, %s9
      // Predicated region
      $region78: #{forward.4} parent=5 // pred_check
        %p790 = pneg %p789
      $region79: #{forward.4} parent=5 // pred_check_branch
        %792 = sbr.rel (%p790) target = $region81
      $region80: #{forward.4} parent=5 // pred_region
        %s793 = ssub.s32 %s9, 2
        // Predicated region
        $region82: #{forward.4} parent=80 // pred_check
          %p794 = pneg %p106
        $region83: #{forward.4} parent=80 // pred_check_branch
          %796 = sbr.rel (%p794) target = $region85
        $region84: #{forward.4} parent=80 // pred_region
          %s797 = smul.u32 8, %s15
          %p798 = scmp.lt.s32.totalorder %s797, 15
          %s799 = scalar_select %p798, %s797, 15
          %s800 = smul.addr %s799, 4
          %s801 = scalar_lea.vmem %s3, %s800
        $region85: #{forward.4} parent=80 // pred_fallthru
          _
      $region81: #{forward.4} parent=5 // pred_fallthru
        _
    $region6: #{forward.4} parent=1 // loop_footer
      %s13 = sadd.s32 1, %s9
    $region7: #{forward.4} parent=1 // loop_footer_branch
      %8 = sbr.rel target = $region3
    $region8: #{forward.4} parent=1 // loop_exit
      _

// kernel: forward.5
$region0: #{forward.5}
  #allocation0 [shape = 'u32[]', space=smem, size = 0x4, offset = 0x4, fixed_abs, tag = 'smem constant byte address 0x4 - core index']
  #allocation1 [shape = 'u32[144,128]{1,0:T(1,128)}', space=vmem, size = 0x12000, scoped, tag = 'internal scratch']
  %s0 = inlined_call_operand.vmem [shape: bf16[4,32,512], index: 0, kind: input, shape index: {}]
  %s1 = inlined_call_operand.vmem [shape: bf16[512,128], index: 1, kind: input, shape index: {}]
  %s2 = inlined_call_operand.vmem [shape: f32[1,128], index: 2, kind: input, shape index: {}]
  %s3 = inlined_call_operand.vmem [shape: bf16[32,128], index: 3, kind: output, shape index: {}]
  %s4 = sld [smem:[#allocation0]]
  $region68: #{forward.5} parent=0
    _
  %s6 = ssub.s32 1, %s4
  %s7 = scalar_select 0, %s6, %s4
  $region1: #{forward.5} parent=0
    #allocation2 [shape = 'u8[131072]{0}', space=vmem, size = 0x20000, scoped, tag = 'input window, operand 0']
    loop: start=0, step=1, limit=4
    $region2: #{forward.5} parent=1 // loop_pre_header
      _
    $region3: #{forward.5} parent=1 // loop_header
      %s9 = sphi 0, %s13
      %p10 = scmp.ge.s32.totalorder %s9, 4
      %s19 = sphi 0, %s21
      %s22 = sphi 0, %s19
      %s23 = sphi 0, %s22
      %s39 = sphi 0, %s23
      %s43 = sphi 0, %s43
      %s45 = sphi 0, %s43
      %s46 = sphi 0, %s45
      %s60 = sphi 0, %s46
      %s64 = sphi 0, %s64
      %s66 = sphi 0, %s64
      %s67 = sphi 0, %s66
      %s81 = sphi 0, %s67
      %s87 = sphi 0, %s89
      %s90 = sphi 0, %s87
      %s91 = sphi 0, %s90
      %s107 = sphi 0, %s91
    $region4: #{forward.5} parent=1 // loop_header_branch
      %12 = sbr.rel (%p10) target = $region8
    $region5: #{forward.5} parent=1 // loop_body
      %s14 = ssub.s32 %s9, 1
      %s15 = ssub.s32 %s9, 2
      %s16 = sadd.s32 %s9, 1
      %s17 = ssub.s32 %s9, %s16
      %p18 = scmp.eq.s32.totalorder %s17, 0
      %s20 = sadd.s32 %s19, 1
      %s21 = scalar_select %p18, %s19, %s20
      %p24 = pneg %p18
      %p25 = scmp.eq.s32.totalorder %s9, 1
      %p26 = por %p24, %p25
      %p27 = scmp.ne.s32.totalorder %s19, %s22
      %p28 = scmp.eq.s32.totalorder %s9, 0
      %p29 = por %p27, %p28
      %p30 = scmp.ne.s32.totalorder %s19, %s22
      %p31 = scmp.eq.s32.totalorder %s14, 1
      %p32 = por %p30, %p31
      %p33 = scmp.ne.s32.totalorder %s22, %s23
      %p34 = scmp.eq.s32.totalorder %s14, 0
      %p35 = por %p33, %p34
      %p36 = scmp.ne.s32.totalorder %s22, %s23
      %p37 = scmp.eq.s32.totalorder %s15, 1
      %p38 = por %p36, %p37
      %p40 = scmp.ne.s32.totalorder %s23, %s39
      %p41 = scmp.eq.s32.totalorder %s15, 0
      %p42 = por %p40, %p41
      %s44 = sadd.s32 %s43, 1
      %p47 = scmp.eq.s32.totalorder %s9, 1
      %p48 = scmp.ne.s32.totalorder %s43, %s45
      %p49 = scmp.eq.s32.totalorder %s9, 0
      %p50 = por %p48, %p49
      %p51 = scmp.ne.s32.totalorder %s43, %s45
      %p52 = scmp.eq.s32.totalorder %s14, 1
      %p53 = por %p51, %p52
      %p54 = scmp.ne.s32.totalorder %s45, %s46
      %p55 = scmp.eq.s32.totalorder %s14, 0
      %p56 = por %p54, %p55
      %p57 = scmp.ne.s32.totalorder %s45, %s46
      %p58 = scmp.eq.s32.totalorder %s15, 1
      %p59 = por %p57, %p58
      %p61 = scmp.ne.s32.totalorder %s46, %s60
      %p62 = scmp.eq.s32.totalorder %s15, 0
      %p63 = por %p61, %p62
      %s65 = sadd.s32 %s64, 1
      %p68 = scmp.eq.s32.totalorder %s9, 1
      %p69 = scmp.ne.s32.totalorder %s64, %s66
      %p70 = scmp.eq.s32.totalorder %s9, 0
      %p71 = por %p69, %p70
      %p72 = scmp.ne.s32.totalorder %s64, %s66
      %p73 = scmp.eq.s32.totalorder %s14, 1
      %p74 = por %p72, %p73
      %p75 = scmp.ne.s32.totalorder %s66, %s67
      %p76 = scmp.eq.s32.totalorder %s14, 0
      %p77 = por %p75, %p76
      %p78 = scmp.ne.s32.totalorder %s66, %s67
      %p79 = scmp.eq.s32.totalorder %s15, 1
      %p80 = por %p78, %p79
      %p82 = scmp.ne.s32.totalorder %s67, %s81
      %p83 = scmp.eq.s32.totalorder %s15, 0
      %p84 = por %p82, %p83
      %s85 = ssub.s32 %s9, %s16
      %p86 = scmp.eq.s32.totalorder %s85, 0
      %s88 = sadd.s32 %s87, 1
      %s89 = scalar_select %p86, %s87, %s88
      %p92 = pneg %p86
      %p93 = scmp.eq.s32.totalorder %s9, 1
      %p94 = por %p92, %p93
      %p95 = scmp.ne.s32.totalorder %s87, %s90
      %p96 = scmp.eq.s32.totalorder %s9, 0
      %p97 = por %p95, %p96
      %p98 = scmp.ne.s32.totalorder %s87, %s90
      %p99 = scmp.eq.s32.totalorder %s14, 1
      %p100 = por %p98, %p99
      %p101 = scmp.ne.s32.totalorder %s90, %s91
      %p102 = scmp.eq.s32.totalorder %s14, 0
      %p103 = por %p101, %p102
      %p104 = scmp.ne.s32.totalorder %s90, %s91
      %p105 = scmp.eq.s32.totalorder %s15, 1
      %p106 = por %p104, %p105
      %p108 = scmp.ne.s32.totalorder %s91, %s107
      %p109 = scmp.eq.s32.totalorder %s15, 0
      %p110 = por %p108, %p109
      %p111 = scmp.le.s32.totalorder 1, %s9
      %p112 = scmp.lt.s32.totalorder %s9, 3
      %p113 = pnand %p111, %p112
      %p114 = pneg %p113
      // Predicated region
      $region9: #{forward.5} parent=5 // pred_check
        _
      $region10: #{forward.5} parent=5 // pred_check_branch
        %116 = sbr.rel (%p113) target = $region12
      $region11: #{forward.5} parent=5 // pred_region
        %s117 = ssub.s32 %s9, 1
        // Predicated region
        $region13: #{forward.5} parent=11 // pred_check
          %p118 = pneg %p56
        $region14: #{forward.5} parent=11 // pred_check_branch
          %120 = sbr.rel (%p118) target = $region16
        $region15: #{forward.5} parent=11 // pred_region
          _
        $region16: #{forward.5} parent=11 // pred_fallthru
          _
        // Predicated region
        $region17: #{forward.5} parent=11 // pred_check
          %p121 = pneg %p77
        $region18: #{forward.5} parent=11 // pred_check_branch
          %123 = sbr.rel (%p121) target = $region20
        $region19: #{forward.5} parent=11 // pred_region
          _
        $region20: #{forward.5} parent=11 // pred_fallthru
          _
      $region12: #{forward.5} parent=5 // pred_fallthru
        _
      %p124 = scmp.lt.s32.totalorder %s9, 2
      // Predicated region
      $region21: #{forward.5} parent=5 // pred_check
        %p125 = pneg %p124
      $region22: #{forward.5} parent=5 // pred_check_branch
        %127 = sbr.rel (%p125) target = $region24
      $region23: #{forward.5} parent=5 // pred_region
        // Predicated region
        $region25: #{forward.5} parent=23 // pred_check
          %p128 = pneg %p29
        $region26: #{forward.5} parent=23 // pred_check_branch
          %130 = sbr.rel (%p128) target = $region28
        $region27: #{forward.5} parent=23 // pred_region
          %s131 = sand.u32 %s19, 1
          %s132 = sand.u32 %s19, 1
          %s133 = smul.addr %s132, 128
          %s134 = scalar_lea.vmem [#allocation2], %s133
          %s135 = smul.u32 2, %s9
          %s136 = smul.addr %s135, 4
          %s137 = smul.addr %s136, 4
          %s138 = scalar_lea.vmem %s0, %s137
          // Predicated region
          $region29: #{forward.5} parent=27 // pred_check
            _
          $region30: #{forward.5} parent=27 // pred_check_branch
            %140 = sbr.rel (0) target = $region32
          $region31: #{forward.5} parent=27 // pred_region
            // Predicated region
            $region33: #{forward.5} parent=31 // pred_check
              _
            $region34: #{forward.5} parent=31 // pred_check_branch
              %142 = sbr.rel (0) target = $region36
            $region35: #{forward.5} parent=31 // pred_region
              loop: start=0, step=1, limit=1
              $region37: #{forward.5} parent=35 // loop_pre_header
                _
              $region38: #{forward.5} parent=35 // loop_header
                %s144 = sphi 0, %s148
                %p145 = scmp.ge.s32.totalorder %s144, 1
                %s149 = sphi %s138, %s138
                %s150 = sphi %s134, %s134
              $region39: #{forward.5} parent=35 // loop_header_branch
                %147 = sbr.rel (%p145) target = $region43
              $region40: #{forward.5} parent=35 // loop_body
                %v151 = vld [vmem:[%s149] sm:$0xff]
                %152 = vst [vmem:[%s150] sm:$0xff] %v151
                %v153 = vld [vmem:[%s149 + $0x8] sm:$0xff]
                %154 = vst [vmem:[%s150 + $0x8] sm:$0xff] %v153
                %v155 = vld [vmem:[%s149 + $0x10] sm:$0xff]
                %156 = vst [vmem:[%s150 + $0x10] sm:$0xff] %v155
                %v157 = vld [vmem:[%s149 + $0x18] sm:$0xff]
                %158 = vst [vmem:[%s150 + $0x18] sm:$0xff] %v157
                %v159 = vld [vmem:[%s149 + $0x40] sm:$0xff]
                %160 = vst [vmem:[%s150 + $0x20] sm:$0xff] %v159
                %v161 = vld [vmem:[%s149 + $0x48] sm:$0xff]
                %162 = vst [vmem:[%s150 + $0x28] sm:$0xff] %v161
                %v163 = vld [vmem:[%s149 + $0x50] sm:$0xff]
                %164 = vst [vmem:[%s150 + $0x30] sm:$0xff] %v163
                %v165 = vld [vmem:[%s149 + $0x58] sm:$0xff]
                %166 = vst [vmem:[%s150 + $0x38] sm:$0xff] %v165
                %v167 = vld [vmem:[%s149 + $0x80] sm:$0xff]
                %168 = vst [vmem:[%s150 + $0x40] sm:$0xff] %v167
                %v169 = vld [vmem:[%s149 + $0x88] sm:$0xff]
                %170 = vst [vmem:[%s150 + $0x48] sm:$0xff] %v169
                %v171 = vld [vmem:[%s149 + $0x90] sm:$0xff]
                %172 = vst [vmem:[%s150 + $0x50] sm:$0xff] %v171
                %v173 = vld [vmem:[%s149 + $0x98] sm:$0xff]
                %174 = vst [vmem:[%s150 + $0x58] sm:$0xff] %v173
                %v175 = vld [vmem:[%s149 + $0xc0] sm:$0xff]
                %176 = vst [vmem:[%s150 + $0x60] sm:$0xff] %v175
                %v177 = vld [vmem:[%s149 + $0xc8] sm:$0xff]
                %178 = vst [vmem:[%s150 + $0x68] sm:$0xff] %v177
                %v179 = vld [vmem:[%s149 + $0xd0] sm:$0xff]
                %180 = vst [vmem:[%s150 + $0x70] sm:$0xff] %v179
                %v181 = vld [vmem:[%s149 + $0xd8] sm:$0xff]
                %182 = vst [vmem:[%s150 + $0x78] sm:$0xff] %v181
              $region41: #{forward.5} parent=35 // loop_footer
                %s148 = sadd.s32 1, %s144
              $region42: #{forward.5} parent=35 // loop_footer_branch
                %143 = sbr.rel target = $region38
              $region43: #{forward.5} parent=35 // loop_exit
                _
            $region36: #{forward.5} parent=31 // pred_fallthru
              _
            // Predicated region
            $region44: #{forward.5} parent=31 // pred_check
              _
            $region45: #{forward.5} parent=31 // pred_check_branch
              %184 = sbr.rel target = $region47
            $region46: #{forward.5} parent=31 // pred_region
              _
            $region47: #{forward.5} parent=31 // pred_fallthru
              _
          $region32: #{forward.5} parent=27 // pred_fallthru
            _
          %185 = vnop
        $region28: #{forward.5} parent=23 // pred_fallthru
          _
      $region24: #{forward.5} parent=5 // pred_fallthru
        _
      %p186 = scmp.le.s32.totalorder 1, %s9
      %p187 = scmp.lt.s32.totalorder %s9, 3
      %p188 = pnand %p186, %p187
      %p189 = pneg %p188
      // Predicated region
      $region48: #{forward.5} parent=5 // pred_check
        _
      $region49: #{forward.5} parent=5 // pred_check_branch
        %191 = sbr.rel (%p188) target = $region51
      $region50: #{forward.5} parent=5 // pred_region
        %s192 = ssub.s32 %s9, 1
        %s193 = sand.u32 %s22, 1
        %s194 = sand.u32 %s22, 1
        %s195 = smul.addr %s194, 128
        %s196 = scalar_lea.vmem [#allocation2], %s195
        // Predicated region
        $region52: #{forward.5} parent=50 // pred_check
          %p197 = pneg %p35
        $region53: #{forward.5} parent=50 // pred_check_branch
          %199 = sbr.rel (%p197) target = $region55
        $region54: #{forward.5} parent=50 // pred_region
          _
        $region55: #{forward.5} parent=50 // pred_fallthru
          _
        %s200 = sand.u32 %s22, 1
        %s201 = sand.u32 %s22, 1
        %s202 = smul.addr %s201, 128
        %s203 = scalar_lea.vmem [#allocation2], %s202
        %p204 = pneg %p35
        %p205 = pneg %p32
        %p206 = pneg %p56
        %p207 = pneg %p53
        %p208 = pneg %p77
        %p209 = pneg %p74
        %p210 = pneg %p103
        %p211 = pneg %p100
        %s212 = smul.u32 2, %s14
        %p213 = scmp.lt.s32.totalorder %s212, 3
        %s214 = scalar_select %p213, %s212, 3
        %s215 = smul.addr %s214, 4
        %s216 = scalar_lea.vmem %s3, %s215
        %s217 = smul.u32 2, %s14
        %s218 = smul.u32 2, %s14
        %p219 = scmp.lt.s32.totalorder %s218, 3
        %s220 = scalar_select %p219, %s218, 3
        %s221 = smul.addr %s220, 4
        %s222 = scalar_lea.vmem %s3, %s221
        %s223 = smul.u32 2, %s14
        %v225 = vld [vmem:[%s196] sm:$0xff]
        %v226 = vld [vmem:[%s196 + $0x8] sm:$0xff]
        %v227 = vld [vmem:[%s196 + $0x10] sm:$0xff]
        %v228 = vld [vmem:[%s196 + $0x18] sm:$0xff]
        %v229 = vld [vmem:[%s196 + $0x20] sm:$0xff]
        %v230 = vld [vmem:[%s196 + $0x28] sm:$0xff]
        %v231 = vld [vmem:[%s196 + $0x30] sm:$0xff]
        %v232 = vld [vmem:[%s196 + $0x38] sm:$0xff]
        %v233 = vld [vmem:[%s196 + $0x40] sm:$0xff]
        %v234 = vld [vmem:[%s196 + $0x48] sm:$0xff]
        %v235 = vld [vmem:[%s196 + $0x50] sm:$0xff]
        %v236 = vld [vmem:[%s196 + $0x58] sm:$0xff]
        %v237 = vld [vmem:[%s196 + $0x60] sm:$0xff]
        %v238 = vld [vmem:[%s196 + $0x68] sm:$0xff]
        %v239 = vld [vmem:[%s196 + $0x70] sm:$0xff]
        %v240 = vld [vmem:[%s196 + $0x78] sm:$0xff]
        %v241 = vld [vmem:[%s1] sm:$0xf]
        %v242 = vld [vmem:[%s1 + $0x4] sm:$0xf]
        %v243 = vld [vmem:[%s1 + $0x8] sm:$0xf]
        %v244 = vld [vmem:[%s1 + $0xc] sm:$0xf]
        %v245 = vld [vmem:[%s1 + $0x10] sm:$0xf]
        %v246 = vld [vmem:[%s1 + $0x14] sm:$0xf]
        %v247 = vld [vmem:[%s1 + $0x18] sm:$0xf]
        %v248 = vld [vmem:[%s1 + $0x1c] sm:$0xf]
        %v249 = vld [vmem:[%s1 + $0x20] sm:$0xf]
        %v250 = vld [vmem:[%s1 + $0x24] sm:$0xf]
        %v251 = vld [vmem:[%s1 + $0x28] sm:$0xf]
        %v252 = vld [vmem:[%s1 + $0x2c] sm:$0xf]
        %v253 = vld [vmem:[%s1 + $0x30] sm:$0xf]
        %v254 = vld [vmem:[%s1 + $0x34] sm:$0xf]
        %v255 = vld [vmem:[%s1 + $0x38] sm:$0xf]
        %v256 = vld [vmem:[%s1 + $0x3c] sm:$0xf]
        %v257 = vld [vmem:[%s1 + $0x40] sm:$0xf]
        %v258 = vld [vmem:[%s1 + $0x44] sm:$0xf]
        %v259 = vld [vmem:[%s1 + $0x48] sm:$0xf]
        %v260 = vld [vmem:[%s1 + $0x4c] sm:$0xf]
        %v261 = vld [vmem:[%s1 + $0x50] sm:$0xf]
        %v262 = vld [vmem:[%s1 + $0x54] sm:$0xf]
        %v263 = vld [vmem:[%s1 + $0x58] sm:$0xf]
        %v264 = vld [vmem:[%s1 + $0x5c] sm:$0xf]
        %v265 = vld [vmem:[%s1 + $0x60] sm:$0xf]
        %v266 = vld [vmem:[%s1 + $0x64] sm:$0xf]
        %v267 = vld [vmem:[%s1 + $0x68] sm:$0xf]
        %v268 = vld [vmem:[%s1 + $0x6c] sm:$0xf]
        %v269 = vld [vmem:[%s1 + $0x70] sm:$0xf]
        %v270 = vld [vmem:[%s1 + $0x74] sm:$0xf]
        %v271 = vld [vmem:[%s1 + $0x78] sm:$0xf]
        %v272 = vld [vmem:[%s1 + $0x7c] sm:$0xf]
        %v273 = vld [vmem:[%s1 + $0x80] sm:$0xf]
        %v274 = vld [vmem:[%s1 + $0x84] sm:$0xf]
        %v275 = vld [vmem:[%s1 + $0x88] sm:$0xf]
        %v276 = vld [vmem:[%s1 + $0x8c] sm:$0xf]
        %v277 = vld [vmem:[%s1 + $0x90] sm:$0xf]
        %v278 = vld [vmem:[%s1 + $0x94] sm:$0xf]
        %v279 = vld [vmem:[%s1 + $0x98] sm:$0xf]
        %v280 = vld [vmem:[%s1 + $0x9c] sm:$0xf]
        %v281 = vld [vmem:[%s1 + $0xa0] sm:$0xf]
        %v282 = vld [vmem:[%s1 + $0xa4] sm:$0xf]
        %v283 = vld [vmem:[%s1 + $0xa8] sm:$0xf]
        %v284 = vld [vmem:[%s1 + $0xac] sm:$0xf]
        %v285 = vld [vmem:[%s1 + $0xb0] sm:$0xf]
        %v286 = vld [vmem:[%s1 + $0xb4] sm:$0xf]
        %v287 = vld [vmem:[%s1 + $0xb8] sm:$0xf]
        %v288 = vld [vmem:[%s1 + $0xbc] sm:$0xf]
        %v289 = vld [vmem:[%s1 + $0xc0] sm:$0xf]
        %v290 = vld [vmem:[%s1 + $0xc4] sm:$0xf]
        %v291 = vld [vmem:[%s1 + $0xc8] sm:$0xf]
        %v292 = vld [vmem:[%s1 + $0xcc] sm:$0xf]
        %v293 = vld [vmem:[%s1 + $0xd0] sm:$0xf]
        %v294 = vld [vmem:[%s1 + $0xd4] sm:$0xf]
        %v295 = vld [vmem:[%s1 + $0xd8] sm:$0xf]
        %v296 = vld [vmem:[%s1 + $0xdc] sm:$0xf]
        %v297 = vld [vmem:[%s1 + $0xe0] sm:$0xf]
        %v298 = vld [vmem:[%s1 + $0xe4] sm:$0xf]
        %v299 = vld [vmem:[%s1 + $0xe8] sm:$0xf]
        %v300 = vld [vmem:[%s1 + $0xec] sm:$0xf]
        %v301 = vld [vmem:[%s1 + $0xf0] sm:$0xf]
        %v302 = vld [vmem:[%s1 + $0xf4] sm:$0xf]
        %v303 = vld [vmem:[%s1 + $0xf8] sm:$0xf]
        %v304 = vld [vmem:[%s1 + $0xfc] sm:$0xf]
        %v321 = vunpack.c.l.b16 %v225
        %v322 = vunpack.c.h.b16 %v225
        %v323 = vunpack.c.l.b16 %v226
        %v324 = vunpack.c.h.b16 %v226
        %v325 = vunpack.c.l.b16 %v227
        %v326 = vunpack.c.h.b16 %v227
        %v327 = vunpack.c.l.b16 %v228
        %v328 = vunpack.c.h.b16 %v228
        %v329 = vunpack.c.l.b16 %v229
        %v330 = vunpack.c.h.b16 %v229
        %v331 = vunpack.c.l.b16 %v230
        %v332 = vunpack.c.h.b16 %v230
        %v333 = vunpack.c.l.b16 %v231
        %v334 = vunpack.c.h.b16 %v231
        %v335 = vunpack.c.l.b16 %v232
        %v336 = vunpack.c.h.b16 %v232
        %v337 = vunpack.c.l.b16 %v233
        %v338 = vunpack.c.h.b16 %v233
        %v339 = vunpack.c.l.b16 %v234
        %v340 = vunpack.c.h.b16 %v234
        %v341 = vunpack.c.l.b16 %v235
        %v342 = vunpack.c.h.b16 %v235
        %v343 = vunpack.c.l.b16 %v236
        %v344 = vunpack.c.h.b16 %v236
        %v345 = vunpack.c.l.b16 %v237
        %v346 = vunpack.c.h.b16 %v237
        %v347 = vunpack.c.l.b16 %v238
        %v348 = vunpack.c.h.b16 %v238
        %v349 = vunpack.c.l.b16 %v239
        %v350 = vunpack.c.h.b16 %v239
        %v351 = vunpack.c.l.b16 %v240
        %v352 = vunpack.c.h.b16 %v240
        %v353 = vpack.c.b16 %v325, %v321
        %v354 = vpack.c.b16 %v326, %v322
        %v355 = vpack.c.b16 %v327, %v323
        %v356 = vpack.c.b16 %v328, %v324
        %v357 = vpack.c.b16 %v333, %v329
        %v358 = vpack.c.b16 %v334, %v330
        %v359 = vpack.c.b16 %v335, %v331
        %v360 = vpack.c.b16 %v336, %v332
        %v361 = vpack.c.b16 %v341, %v337
        %v362 = vpack.c.b16 %v342, %v338
        %v363 = vpack.c.b16 %v343, %v339
        %v364 = vpack.c.b16 %v344, %v340
        %v365 = vpack.c.b16 %v349, %v345
        %v366 = vpack.c.b16 %v350, %v346
        %v367 = vpack.c.b16 %v351, %v347
        %v368 = vpack.c.b16 %v352, %v348
        %v449 = vunpack.c.l.b16 %v241
        %v450 = vunpack.c.l.b16 %v242
        %v451 = vunpack.c.l.b16 %v243
        %v452 = vunpack.c.l.b16 %v244
        %v453 = vunpack.c.l.b16 %v245
        %v454 = vunpack.c.l.b16 %v246
        %v455 = vunpack.c.l.b16 %v247
        %v456 = vunpack.c.l.b16 %v248
        %v457 = vunpack.c.l.b16 %v249
        %v458 = vunpack.c.l.b16 %v250
        %v459 = vunpack.c.l.b16 %v251
        %v460 = vunpack.c.l.b16 %v252
        %v461 = vunpack.c.l.b16 %v253
        %v462 = vunpack.c.l.b16 %v254
        %v463 = vunpack.c.l.b16 %v255
        %v464 = vunpack.c.l.b16 %v256
        %v465 = vunpack.c.l.b16 %v257
        %v466 = vunpack.c.l.b16 %v258
        %v467 = vunpack.c.l.b16 %v259
        %v468 = vunpack.c.l.b16 %v260
        %v469 = vunpack.c.l.b16 %v261
        %v470 = vunpack.c.l.b16 %v262
        %v471 = vunpack.c.l.b16 %v263
        %v472 = vunpack.c.l.b16 %v264
        %v473 = vunpack.c.l.b16 %v265
        %v474 = vunpack.c.l.b16 %v266
        %v475 = vunpack.c.l.b16 %v267
        %v476 = vunpack.c.l.b16 %v268
        %v477 = vunpack.c.l.b16 %v269
        %v478 = vunpack.c.l.b16 %v270
        %v479 = vunpack.c.l.b16 %v271
        %v480 = vunpack.c.l.b16 %v272
        %v481 = vunpack.c.l.b16 %v273
        %v482 = vunpack.c.l.b16 %v274
        %v483 = vunpack.c.l.b16 %v275
        %v484 = vunpack.c.l.b16 %v276
        %v485 = vunpack.c.l.b16 %v277
        %v486 = vunpack.c.l.b16 %v278
        %v487 = vunpack.c.l.b16 %v279
        %v488 = vunpack.c.l.b16 %v280
        %v489 = vunpack.c.l.b16 %v281
        %v490 = vunpack.c.l.b16 %v282
        %v491 = vunpack.c.l.b16 %v283
        %v492 = vunpack.c.l.b16 %v284
        %v493 = vunpack.c.l.b16 %v285
        %v494 = vunpack.c.l.b16 %v286
        %v495 = vunpack.c.l.b16 %v287
        %v496 = vunpack.c.l.b16 %v288
        %v497 = vunpack.c.l.b16 %v289
        %v498 = vunpack.c.l.b16 %v290
        %v499 = vunpack.c.l.b16 %v291
        %v500 = vunpack.c.l.b16 %v292
        %v501 = vunpack.c.l.b16 %v293
        %v502 = vunpack.c.l.b16 %v294
        %v503 = vunpack.c.l.b16 %v295
        %v504 = vunpack.c.l.b16 %v296
        %v505 = vunpack.c.l.b16 %v297
        %v506 = vunpack.c.l.b16 %v298
        %v507 = vunpack.c.l.b16 %v299
        %v508 = vunpack.c.l.b16 %v300
        %v509 = vunpack.c.l.b16 %v301
        %v510 = vunpack.c.l.b16 %v302
        %v511 = vunpack.c.l.b16 %v303
        %v512 = vunpack.c.l.b16 %v304
        %v513 = vpack.c.b16 %v450, %v449
        %v514 = vpack.c.b16 %v452, %v451
        %v515 = vpack.c.b16 %v454, %v453
        %v516 = vpack.c.b16 %v456, %v455
        %v517 = vpack.c.b16 %v458, %v457
        %v518 = vpack.c.b16 %v460, %v459
        %v519 = vpack.c.b16 %v462, %v461
        %v520 = vpack.c.b16 %v464, %v463
        %v521 = vpack.c.b16 %v466, %v465
        %v522 = vpack.c.b16 %v468, %v467
        %v523 = vpack.c.b16 %v470, %v469
        %v524 = vpack.c.b16 %v472, %v471
        %v525 = vpack.c.b16 %v474, %v473
        %v526 = vpack.c.b16 %v476, %v475
        %v527 = vpack.c.b16 %v478, %v477
        %v528 = vpack.c.b16 %v480, %v479
        %v529 = vpack.c.b16 %v482, %v481
        %v530 = vpack.c.b16 %v484, %v483
        %v531 = vpack.c.b16 %v486, %v485
        %v532 = vpack.c.b16 %v488, %v487
        %v533 = vpack.c.b16 %v490, %v489
        %v534 = vpack.c.b16 %v492, %v491
        %v535 = vpack.c.b16 %v494, %v493
        %v536 = vpack.c.b16 %v496, %v495
        %v537 = vpack.c.b16 %v498, %v497
        %v538 = vpack.c.b16 %v500, %v499
        %v539 = vpack.c.b16 %v502, %v501
        %v540 = vpack.c.b16 %v504, %v503
        %v541 = vpack.c.b16 %v506, %v505
        %v542 = vpack.c.b16 %v508, %v507
        %v543 = vpack.c.b16 %v510, %v509
        %v544 = vpack.c.b16 %v512, %v511
        %577 = vmatprep.subr.bf16.mxu0 0
        %578 = vmatpush1.bf16.msra.mxu0 %v513
        %579 = vmatprep.subr.bf16.mxu0 0
        %580 = vmatpush1.bf16.msra.mxu0 %v514
        %581 = vmatprep.subr.bf16.mxu0 0
        %582 = vmatpush1.bf16.msra.mxu0 %v515
        %583 = vmatprep.subr.bf16.mxu0 0
        %584 = vmatpush1.bf16.msra.mxu0 %v516
        %585 = vmatprep.subr.bf16.mxu0 0
        %586 = vmatpush1.bf16.msra.mxu0 %v517
        %587 = vmatprep.subr.bf16.mxu0 0
        %588 = vmatpush1.bf16.msra.mxu0 %v518
        %589 = vmatprep.subr.bf16.mxu0 0
        %590 = vmatpush1.bf16.msra.mxu0 %v519
        %591 = vmatprep.subr.bf16.mxu0 0
        %592 = vmatpush1.bf16.msra.mxu0 %v520
        %593 = vmatprep.subr.bf16.mxu0 0
        %594 = vmatpush1.bf16.msra.mxu0 %v521
        %595 = vmatprep.subr.bf16.mxu0 0
        %596 = vmatpush1.bf16.msra.mxu0 %v522
        %597 = vmatprep.subr.bf16.mxu0 0
        %598 = vmatpush1.bf16.msra.mxu0 %v523
        %599 = vmatprep.subr.bf16.mxu0 0
        %600 = vmatpush1.bf16.msra.mxu0 %v524
        %601 = vmatprep.subr.bf16.mxu0 0
        %602 = vmatpush1.bf16.msra.mxu0 %v525
        %603 = vmatprep.subr.bf16.mxu0 0
        %604 = vmatpush1.bf16.msra.mxu0 %v526
        %605 = vmatprep.subr.bf16.mxu0 0
        %606 = vmatpush1.bf16.msra.mxu0 %v527
        %607 = vmatprep.subr.bf16.mxu0 0
        %608 = vmatpush1.bf16.msra.mxu0 %v528
        %609 = vmatprep.mubr.bf16.mxu0 %v354
        %610 = vmatmul.mubr.bf16.gmra.mrb[0].mxu0 %v353
        %v611 = vpop.f32.mrb[0].mxu0
        %v612 = vadd.f32 0.0, %v611
        %v613 = vpop.f32.mrb[0].mxu0
        %v614 = vpop.f32.mrb[0].mxu0
        %v615 = vadd.f32 0.0, %v614
        %v616 = vpop.f32.mrb[0].mxu0
        %617 = vmatprep.mubr.bf16.mxu0 %v358
        %618 = vmatmul.mubr.bf16.gmra.mrb[0].mxu0 %v357
        %v619 = vpop.f32.mrb[0].mxu0
        %v620 = vadd.f32 0.0, %v619
        %v621 = vpop.f32.mrb[0].mxu0
        %v622 = vpop.f32.mrb[0].mxu0
        %v623 = vadd.f32 0.0, %v622
        %v624 = vpop.f32.mrb[0].mxu0
        %625 = vmatprep.mubr.bf16.mxu0 %v362
        %626 = vmatmul.mubr.bf16.gmra.mrb[0].mxu0 %v361
        %v627 = vpop.f32.mrb[0].mxu0
        %v628 = vadd.f32 0.0, %v627
        %v629 = vpop.f32.mrb[0].mxu0
        %v630 = vpop.f32.mrb[0].mxu0
        %v631 = vadd.f32 0.0, %v630
        %v632 = vpop.f32.mrb[0].mxu0
        %633 = vmatprep.mubr.bf16.mxu0 %v366
        %634 = vmatmul.mubr.bf16.gmra.mrb[0].mxu0 %v365
        %v635 = vpop.f32.mrb[0].mxu0
        %v636 = vadd.f32 0.0, %v635
        %v637 = vpop.f32.mrb[0].mxu0
        %v638 = vpop.f32.mrb[0].mxu0
        %v639 = vadd.f32 0.0, %v638
        %v640 = vpop.f32.mrb[0].mxu0
        %641 = vdwg.mxu0
        %642 = vmatprep.subr.bf16.mxu0 0
        %643 = vmatpush1.bf16.msra.mxu0 %v529
        %644 = vmatprep.subr.bf16.mxu0 0
        %645 = vmatpush1.bf16.msra.mxu0 %v530
        %646 = vmatprep.subr.bf16.mxu0 0
        %647 = vmatpush1.bf16.msra.mxu0 %v531
        %648 = vmatprep.subr.bf16.mxu0 0
        %649 = vmatpush1.bf16.msra.mxu0 %v532
        %650 = vmatprep.subr.bf16.mxu0 0
        %651 = vmatpush1.bf16.msra.mxu0 %v533
        %652 = vmatprep.subr.bf16.mxu0 0
        %653 = vmatpush1.bf16.msra.mxu0 %v534
        %654 = vmatprep.subr.bf16.mxu0 0
        %655 = vmatpush1.bf16.msra.mxu0 %v535
        %656 = vmatprep.subr.bf16.mxu0 0
        %657 = vmatpush1.bf16.msra.mxu0 %v536
        %658 = vmatprep.subr.bf16.mxu0 0
        %659 = vmatpush1.bf16.msra.mxu0 %v537
        %660 = vmatprep.subr.bf16.mxu0 0
        %661 = vmatpush1.bf16.msra.mxu0 %v538
        %662 = vmatprep.subr.bf16.mxu0 0
        %663 = vmatpush1.bf16.msra.mxu0 %v539
        %664 = vmatprep.subr.bf16.mxu0 0
        %665 = vmatpush1.bf16.msra.mxu0 %v540
        %666 = vmatprep.subr.bf16.mxu0 0
        %667 = vmatpush1.bf16.msra.mxu0 %v541
        %668 = vmatprep.subr.bf16.mxu0 0
        %669 = vmatpush1.bf16.msra.mxu0 %v542
        %670 = vmatprep.subr.bf16.mxu0 0
        %671 = vmatpush1.bf16.msra.mxu0 %v543
        %672 = vmatprep.subr.bf16.mxu0 0
        %673 = vmatpush1.bf16.msra.mxu0 %v544
        %674 = vmatprep.mubr.bf16.mxu0 %v356
        %675 = vmatmul.mubr.bf16.gmra.mrb[0].mxu0 %v355
        %v676 = vpop.f32.mrb[0].mxu0
        %v677 = vadd.f32 %v612, %v676
        %v678 = vpop.f32.mrb[0].mxu0
        %v679 = vpop.f32.mrb[0].mxu0
        %v680 = vadd.f32 %v615, %v679
        %v681 = vpop.f32.mrb[0].mxu0
        %682 = vmatprep.mubr.bf16.mxu0 %v360
        %683 = vmatmul.mubr.bf16.gmra.mrb[0].mxu0 %v359
        %v684 = vpop.f32.mrb[0].mxu0
        %v685 = vadd.f32 %v620, %v684
        %v686 = vpop.f32.mrb[0].mxu0
        %v687 = vpop.f32.mrb[0].mxu0
        %v688 = vadd.f32 %v623, %v687
        %v689 = vpop.f32.mrb[0].mxu0
        %690 = vmatprep.mubr.bf16.mxu0 %v364
        %691 = vmatmul.mubr.bf16.gmra.mrb[0].mxu0 %v363
        %v692 = vpop.f32.mrb[0].mxu0
        %v693 = vadd.f32 %v628, %v692
        %v694 = vpop.f32.mrb[0].mxu0
        %v695 = vpop.f32.mrb[0].mxu0
        %v696 = vadd.f32 %v631, %v695
        %v697 = vpop.f32.mrb[0].mxu0
        %698 = vmatprep.mubr.bf16.mxu0 %v368
        %699 = vmatmul.mubr.bf16.gmra.mrb[0].mxu0 %v367
        %v700 = vpop.f32.mrb[0].mxu0
        %v701 = vadd.f32 %v636, %v700
        %v702 = vpop.f32.mrb[0].mxu0
        %v703 = vpop.f32.mrb[0].mxu0
        %v704 = vadd.f32 %v639, %v703
        %v705 = vpop.f32.mrb[0].mxu0
        %706 = vdwg.mxu0
        %v707 = vmax.f32 %v677, %v693
        %v708 = vmax.f32 %v685, %v701
        %v709 = vmax.f32 %v707, %v708
        %v710 = vmax.f32 %v680, %v696
        %v711 = vmax.f32 %v688, %v704
        %v712 = vmax.f32 %v710, %v711
        %v713 = vld [vmem:[%s2] sm:$0x1]
        %v715 = vlaneseq
        %v716 = vshrl.u32 %v715, 7
        %v717 = vsub.s32 0, %v716
        %v718 = vrot.slane %v713, %v717
        %v720 = vadd.f32 %v709, %v718
        %v721 = vadd.f32 %v712, %v718
        %v722 = vmax.f32 %v720, 0.0
        %v723 = vmax.f32 %v721, 0.0
        %v724 = vpack.c.bf16 %v723, %v722
        %v726 = vunpack.c.l.b16 %v724
        %v727 = vunpack.c.h.b16 %v724
        %v728 = vpack.c.b16 %v726, %v726
        %v729 = vpack.c.b16 %v727, %v727
        %732 = vst [vmem:[%s222] sm:$0xf] %v728
        %733 = vst [vmem:[%s222 + $0x4] sm:$0xf] %v729
        %s734 = smul.u32 2, %s14
        %p735 = scmp.lt.s32.totalorder %s734, 3
        %s736 = scalar_select %p735, %s734, 3
        %s737 = smul.addr %s736, 4
        %s738 = scalar_lea.vmem %s3, %s737
        // Predicated region
        $region56: #{forward.5} parent=50 // pred_check
          %p739 = pneg %p100
        $region57: #{forward.5} parent=50 // pred_check_branch
          %741 = sbr.rel (%p739) target = $region59
        $region58: #{forward.5} parent=50 // pred_region
          %s742 = smul.u32 2, %s14
        $region59: #{forward.5} parent=50 // pred_fallthru
          _
      $region51: #{forward.5} parent=5 // pred_fallthru
        _
      %p743 = scmp.le.s32.totalorder 2, %s9
      // Predicated region
      $region60: #{forward.5} parent=5 // pred_check
        %p744 = pneg %p743
      $region61: #{forward.5} parent=5 // pred_check_branch
        %746 = sbr.rel (%p744) target = $region63
      $region62: #{forward.5} parent=5 // pred_region
        %s747 = ssub.s32 %s9, 2
        // Predicated region
        $region64: #{forward.5} parent=62 // pred_check
          %p748 = pneg %p106
        $region65: #{forward.5} parent=62 // pred_check_branch
          %750 = sbr.rel (%p748) target = $region67
        $region66: #{forward.5} parent=62 // pred_region
          %s751 = smul.u32 2, %s15
          %p752 = scmp.lt.s32.totalorder %s751, 3
          %s753 = scalar_select %p752, %s751, 3
          %s754 = smul.addr %s753, 4
          %s755 = scalar_lea.vmem %s3, %s754
        $region67: #{forward.5} parent=62 // pred_fallthru
          _
      $region63: #{forward.5} parent=5 // pred_fallthru
        _
    $region6: #{forward.5} parent=1 // loop_footer
      %s13 = sadd.s32 1, %s9
    $region7: #{forward.5} parent=1 // loop_footer_branch
      %8 = sbr.rel target = $region3
    $region8: #{forward.5} parent=1 // loop_exit
      _

// kernel: forward.7
$region0: #{forward.7}
  #allocation0 [shape = 'u32[]', space=smem, size = 0x4, offset = 0x4, fixed_abs, tag = 'smem constant byte address 0x4 - core index']
  #allocation1 [shape = 'u32[144,128]{1,0:T(1,128)}', space=vmem, size = 0x12000, scoped, tag = 'internal scratch']
  %s0 = inlined_call_operand.vmem [shape: bf16[2,256], index: 0, kind: input, shape index: {}]
  %s1 = inlined_call_operand.vmem [shape: bf16[256,128], index: 1, kind: input, shape index: {}]
  %s2 = inlined_call_operand.vmem [shape: f32[1,128], index: 2, kind: input, shape index: {}]
  %s3 = inlined_call_operand.hbm [shape: f32[2,128], index: 3, kind: output, shape index: {}]
  %s4 = sld [smem:[#allocation0]]
  $region22: #{forward.7} parent=0
    _
  %s6 = ssub.s32 1, %s4
  %s7 = scalar_select 0, %s6, %s4
  $region1: #{forward.7} parent=0
    #allocation2 [shape = 'u8[1024]{0}', space=vmem, size = 0x400, scoped, tag = 'output window, operand 0, single buffered']
    #allocation3 [shape = 's32[1]{0}', space=sflag, size = 0x4, scoped, tag = 'scoped memory for forward.7']
    %8 = vsyncpa [#allocation3], 0
    // Predicated region
    $region2: #{forward.7} parent=1 // pred_check
      _
    $region3: #{forward.7} parent=1 // pred_check_branch
      %10 = sbr.rel (0) target = $region5
    $region4: #{forward.7} parent=1 // pred_region
      _
    $region5: #{forward.7} parent=1 // pred_fallthru
      _
    // Predicated region
    $region6: #{forward.7} parent=1 // pred_check
      _
    $region7: #{forward.7} parent=1 // pred_check_branch
      %12 = sbr.rel (0) target = $region9
    $region8: #{forward.7} parent=1 // pred_region
      _
    $region9: #{forward.7} parent=1 // pred_fallthru
      _
    // Predicated region
    $region10: #{forward.7} parent=1 // pred_check
      _
    $region11: #{forward.7} parent=1 // pred_check_branch
      %14 = sbr.rel (0) target = $region13
    $region12: #{forward.7} parent=1 // pred_region
      _
    $region13: #{forward.7} parent=1 // pred_fallthru
      _
    %v16 = vld [vmem:[%s0] sm:$0x3]
    %v17 = vld [vmem:[%s1] sm:$0xf]
    %v18 = vld [vmem:[%s1 + $0x4] sm:$0xf]
    %v19 = vld [vmem:[%s1 + $0x8] sm:$0xf]
    %v20 = vld [vmem:[%s1 + $0xc] sm:$0xf]
    %v21 = vld [vmem:[%s1 + $0x10] sm:$0xf]
    %v22 = vld [vmem:[%s1 + $0x14] sm:$0xf]
    %v23 = vld [vmem:[%s1 + $0x18] sm:$0xf]
    %v24 = vld [vmem:[%s1 + $0x1c] sm:$0xf]
    %v25 = vld [vmem:[%s1 + $0x20] sm:$0xf]
    %v26 = vld [vmem:[%s1 + $0x24] sm:$0xf]
    %v27 = vld [vmem:[%s1 + $0x28] sm:$0xf]
    %v28 = vld [vmem:[%s1 + $0x2c] sm:$0xf]
    %v29 = vld [vmem:[%s1 + $0x30] sm:$0xf]
    %v30 = vld [vmem:[%s1 + $0x34] sm:$0xf]
    %v31 = vld [vmem:[%s1 + $0x38] sm:$0xf]
    %v32 = vld [vmem:[%s1 + $0x3c] sm:$0xf]
    %v33 = vld [vmem:[%s1 + $0x40] sm:$0xf]
    %v34 = vld [vmem:[%s1 + $0x44] sm:$0xf]
    %v35 = vld [vmem:[%s1 + $0x48] sm:$0xf]
    %v36 = vld [vmem:[%s1 + $0x4c] sm:$0xf]
    %v37 = vld [vmem:[%s1 + $0x50] sm:$0xf]
    %v38 = vld [vmem:[%s1 + $0x54] sm:$0xf]
    %v39 = vld [vmem:[%s1 + $0x58] sm:$0xf]
    %v40 = vld [vmem:[%s1 + $0x5c] sm:$0xf]
    %v41 = vld [vmem:[%s1 + $0x60] sm:$0xf]
    %v42 = vld [vmem:[%s1 + $0x64] sm:$0xf]
    %v43 = vld [vmem:[%s1 + $0x68] sm:$0xf]
    %v44 = vld [vmem:[%s1 + $0x6c] sm:$0xf]
    %v45 = vld [vmem:[%s1 + $0x70] sm:$0xf]
    %v46 = vld [vmem:[%s1 + $0x74] sm:$0xf]
    %v47 = vld [vmem:[%s1 + $0x78] sm:$0xf]
    %v48 = vld [vmem:[%s1 + $0x7c] sm:$0xf]
    %v49 = vld [vmem:[%s2] sm:$0x1]
    %v51 = vlaneseq
    %v52 = vshrl.u32 %v51, 7
    %v53 = vsub.s32 0, %v52
    %v54 = vrot.slane %v49, %v53
    %v58 = vunpack.c.l.s4 1966171168
    %v59 = vunpack.c.0.s8 %v58
    %v60 = vlaneseq
    %v61 = vshrl.u32 %v60, 7
    %v62 = vsub.s32 %v59, %v61
    %v63 = vrot.slane %v16, %v62
    %v64 = vcombine.high %v63, %v63
    %v66 = vunpack.c.l.s4 1966171168
    %v67 = vunpack.c.0.s8 %v66
    %v68 = vlaneseq
    %v69 = vshrl.u32 %v68, 7
    %v70 = vsub.s32 %v67, %v69
    %v71 = vrot.slane %v63, %v70
    %v73 = vunpack.c.l.s4 1966171168
    %v74 = vunpack.c.0.s8 %v73
    %v75 = vlaneseq
    %v76 = vshrl.u32 %v75, 7
    %v77 = vsub.s32 %v74, %v76
    %v78 = vrot.slane %v64, %v77
    %v113 = vunpack.c.l.b16 %v17
    %v114 = vunpack.c.l.b16 %v18
    %v115 = vunpack.c.l.b16 %v19
    %v116 = vunpack.c.l.b16 %v20
    %v117 = vunpack.c.l.b16 %v21
    %v118 = vunpack.c.l.b16 %v22
    %v119 = vunpack.c.l.b16 %v23
    %v120 = vunpack.c.l.b16 %v24
    %v121 = vunpack.c.l.b16 %v25
    %v122 = vunpack.c.l.b16 %v26
    %v123 = vunpack.c.l.b16 %v27
    %v124 = vunpack.c.l.b16 %v28
    %v125 = vunpack.c.l.b16 %v29
    %v126 = vunpack.c.l.b16 %v30
    %v127 = vunpack.c.l.b16 %v31
    %v128 = vunpack.c.l.b16 %v32
    %v129 = vunpack.c.l.b16 %v33
    %v130 = vunpack.c.l.b16 %v34
    %v131 = vunpack.c.l.b16 %v35
    %v132 = vunpack.c.l.b16 %v36
    %v133 = vunpack.c.l.b16 %v37
    %v134 = vunpack.c.l.b16 %v38
    %v135 = vunpack.c.l.b16 %v39
    %v136 = vunpack.c.l.b16 %v40
    %v137 = vunpack.c.l.b16 %v41
    %v138 = vunpack.c.l.b16 %v42
    %v139 = vunpack.c.l.b16 %v43
    %v140 = vunpack.c.l.b16 %v44
    %v141 = vunpack.c.l.b16 %v45
    %v142 = vunpack.c.l.b16 %v46
    %v143 = vunpack.c.l.b16 %v47
    %v144 = vunpack.c.l.b16 %v48
    %v145 = vpack.c.b16 %v114, %v113
    %v146 = vpack.c.b16 %v116, %v115
    %v147 = vpack.c.b16 %v118, %v117
    %v148 = vpack.c.b16 %v120, %v119
    %v149 = vpack.c.b16 %v122, %v121
    %v150 = vpack.c.b16 %v124, %v123
    %v151 = vpack.c.b16 %v126, %v125
    %v152 = vpack.c.b16 %v128, %v127
    %v153 = vpack.c.b16 %v130, %v129
    %v154 = vpack.c.b16 %v132, %v131
    %v155 = vpack.c.b16 %v134, %v133
    %v156 = vpack.c.b16 %v136, %v135
    %v157 = vpack.c.b16 %v138, %v137
    %v158 = vpack.c.b16 %v140, %v139
    %v159 = vpack.c.b16 %v142, %v141
    %v160 = vpack.c.b16 %v144, %v143
    %177 = vmatprep.subr.bf16.mxu0 0
    %178 = vmatpush1.bf16.msra.mxu0 %v145
    %179 = vmatprep.subr.bf16.mxu0 0
    %180 = vmatpush1.bf16.msra.mxu0 %v146
    %181 = vmatprep.subr.bf16.mxu0 0
    %182 = vmatpush1.bf16.msra.mxu0 %v147
    %183 = vmatprep.subr.bf16.mxu0 0
    %184 = vmatpush1.bf16.msra.mxu0 %v148
    %185 = vmatprep.subr.bf16.mxu0 0
    %186 = vmatpush1.bf16.msra.mxu0 %v149
    %187 = vmatprep.subr.bf16.mxu0 0
    %188 = vmatpush1.bf16.msra.mxu0 %v150
    %189 = vmatprep.subr.bf16.mxu0 0
    %190 = vmatpush1.bf16.msra.mxu0 %v151
    %191 = vmatprep.subr.bf16.mxu0 0
    %192 = vmatpush1.bf16.msra.mxu0 %v152
    %193 = vmatprep.subr.bf16.mxu0 0
    %194 = vmatpush1.bf16.msra.mxu0 %v153
    %195 = vmatprep.subr.bf16.mxu0 0
    %196 = vmatpush1.bf16.msra.mxu0 %v154
    %197 = vmatprep.subr.bf16.mxu0 0
    %198 = vmatpush1.bf16.msra.mxu0 %v155
    %199 = vmatprep.subr.bf16.mxu0 0
    %200 = vmatpush1.bf16.msra.mxu0 %v156
    %201 = vmatprep.subr.bf16.mxu0 0
    %202 = vmatpush1.bf16.msra.mxu0 %v157
    %203 = vmatprep.subr.bf16.mxu0 0
    %204 = vmatpush1.bf16.msra.mxu0 %v158
    %205 = vmatprep.subr.bf16.mxu0 0
    %206 = vmatpush1.bf16.msra.mxu0 %v159
    %207 = vmatprep.subr.bf16.mxu0 0
    %208 = vmatpush1.bf16.msra.mxu0 %v160
    %209 = vmatprep.mubr.bf16.mxu0 %v78
    %210 = vmatmul.mubr.bf16.gmra.mrb[0].mxu0 %v71
    %v211 = vpop.f32.mrb[0].mxu0
    %v212 = vadd.f32 %v54, %v211
    %v213 = vpop.f32.mrb[0].mxu0
    %v214 = vpop.f32.mrb[0].mxu0
    %v215 = vpop.f32.mrb[0].mxu0
    %216 = vdwg.mxu0
    %v217 = vlaneseq
    %v218 = vand.u32 %v217, 127
    %vm219 = vcmp.lt.s32.totalorder %v218, 10
    %v220 = vsel %vm219, %v212, -1e+30
    %vm221 = vcmask 1041408
    %v222 = vsel %vm221, %v220, -inf
    %223 = vmax.xlane.f32.xlu0 %v222
    %v224 = vpop.xlane.xlu0 %223
    %v225 = vsub.f32 %v220, %v224
    %v226 = vmul.f32 %v225, 1.442695
    %v227 = vpow.pop %v226
    %v228 = vsel %vm221, %v227, 0.0
    %229 = vadd.xlane.f32.xlu0 %v228
    %v230 = vpop.xlane.xlu0 %229
    %v231 = vlog2.pop %v230
    %v232 = vmul.f32 %v231, 0.6931472
    %v233 = vsub.f32 %v225, %v232
    %234 = vst [vmem:[#allocation2] sm:$0x3] %v233
    // Predicated region
    $region14: #{forward.7} parent=1 // pred_check
      _
    $region15: #{forward.7} parent=1 // pred_check_branch
      %236 = sbr.rel (0) target = $region17
    $region16: #{forward.7} parent=1 // pred_region
      %s238 = ssub.s32 32, 32
      %239 = vsyncadd [#allocation3], %s238
      %s241 = sshll.u32 [#allocation2], 4
      %s242 = int_to_ptr.vmem [resolvable:$true] %s241
      %244 = dma.vmem_to_hbm [thread:$0]  %s242, 32, %s3, [#allocation3]
    $region17: #{forward.7} parent=1 // pred_fallthru
      _
    // Predicated region
    $region18: #{forward.7} parent=1 // pred_check
      _
    $region19: #{forward.7} parent=1 // pred_check_branch
      %246 = sbr.rel (0) target = $region21
    $region20: #{forward.7} parent=1 // pred_region
      %247 = dma.done [#allocation3], 32
    $region21: #{forward.7} parent=1 // pred_fallthru
      _
    %248 = vsyncpa [#allocation3], 1

// kernel: forward.6
$region0: #{forward.6}
  #allocation0 [shape = 'u32[]', space=smem, size = 0x4, offset = 0x4, fixed_abs, tag = 'smem constant byte address 0x4 - core index']
  #allocation1 [shape = 'u32[144,128]{1,0:T(1,128)}', space=vmem, size = 0x12000, scoped, tag = 'internal scratch']
  #allocation2 [shape = 'f32[2,256]{1,0:T(2,128)}', space=vmem, size = 0x800, scoped, tag = 'scratch operand']
  %s0 = inlined_call_operand.vmem [shape: bf16[2,896], index: 0, kind: input, shape index: {}]
  %s1 = inlined_call_operand.vmem [shape: bf16[896,256], index: 1, kind: input, shape index: {}]
  %s2 = inlined_call_operand.vmem [shape: f32[1,256], index: 2, kind: input, shape index: {}]
  %s3 = inlined_call_operand.vmem [shape: bf16[2,256], index: 3, kind: output, shape index: {}]
  %s4 = sld [smem:[#allocation0]]
  $region30: #{forward.6} parent=0
    _
  %s6 = ssub.s32 1, %s4
  %s7 = scalar_select 0, %s6, %s4
  // Predicated region
  $region2: #{forward.6} parent=0 // pred_check
    _
  $region3: #{forward.6} parent=0 // pred_check_branch
    %9 = sbr.rel (0) target = $region5
  $region4: #{forward.6} parent=0 // pred_region
    _
  $region5: #{forward.6} parent=0 // pred_fallthru
    _
  // Predicated region
  $region6: #{forward.6} parent=0 // pred_check
    _
  $region7: #{forward.6} parent=0 // pred_check_branch
    %11 = sbr.rel (0) target = $region9
  $region8: #{forward.6} parent=0 // pred_region
    _
  $region9: #{forward.6} parent=0 // pred_fallthru
    _
  // Predicated region
  $region10: #{forward.6} parent=0 // pred_check
    _
  $region11: #{forward.6} parent=0 // pred_check_branch
    %13 = sbr.rel (0) target = $region13
  $region12: #{forward.6} parent=0 // pred_region
    _
  $region13: #{forward.6} parent=0 // pred_fallthru
    _
  %p15 = scmp.eq.s32.totalorder 0, 0
  // Predicated region
  $region14: #{forward.6} parent=0 // pred_check
    %p16 = pneg %p15
  $region15: #{forward.6} parent=0 // pred_check_branch
    %18 = sbr.rel (%p16) target = $region17
  $region16: #{forward.6} parent=0 // pred_region
    %19 = vst [vmem:[#allocation2] sm:$0xf] 0.0
  $region17: #{forward.6} parent=0 // pred_fallthru
    _
  %v20 = vld [vmem:[#allocation2] sm:$0xf]
  %v21 = vld [vmem:[%s0] sm:$0x7f]
  %v22 = vld [vmem:[%s1] sm:$0xff]
  %v23 = vld [vmem:[%s1 + $0x8] sm:$0xff]
  %v24 = vld [vmem:[%s1 + $0x10] sm:$0xff]
  %v25 = vld [vmem:[%s1 + $0x18] sm:$0xff]
  %v26 = vld [vmem:[%s1 + $0x20] sm:$0xff]
  %v27 = vld [vmem:[%s1 + $0x28] sm:$0xff]
  %v28 = vld [vmem:[%s1 + $0x30] sm:$0xff]
  %v29 = vld [vmem:[%s1 + $0x38] sm:$0xff]
  %v30 = vld [vmem:[%s1 + $0x40] sm:$0xff]
  %v31 = vld [vmem:[%s1 + $0x48] sm:$0xff]
  %v32 = vld [vmem:[%s1 + $0x50] sm:$0xff]
  %v33 = vld [vmem:[%s1 + $0x58] sm:$0xff]
  %v34 = vld [vmem:[%s1 + $0x60] sm:$0xff]
  %v35 = vld [vmem:[%s1 + $0x68] sm:$0xff]
  %v36 = vld [vmem:[%s1 + $0x70] sm:$0xff]
  %v37 = vld [vmem:[%s1 + $0x78] sm:$0xff]
  %v38 = vld [vmem:[%s1 + $0x80] sm:$0xff]
  %v39 = vld [vmem:[%s1 + $0x88] sm:$0xff]
  %v40 = vld [vmem:[%s1 + $0x90] sm:$0xff]
  %v41 = vld [vmem:[%s1 + $0x98] sm:$0xff]
  %v42 = vld [vmem:[%s1 + $0xa0] sm:$0xff]
  %v43 = vld [vmem:[%s1 + $0xa8] sm:$0xff]
  %v44 = vld [vmem:[%s1 + $0xb0] sm:$0xff]
  %v45 = vld [vmem:[%s1 + $0xb8] sm:$0xff]
  %v46 = vld [vmem:[%s1 + $0xc0] sm:$0xff]
  %v47 = vld [vmem:[%s1 + $0xc8] sm:$0xff]
  %v48 = vld [vmem:[%s1 + $0xd0] sm:$0xff]
  %v49 = vld [vmem:[%s1 + $0xd8] sm:$0xff]
  %v50 = vld [vmem:[%s1 + $0xe0] sm:$0xff]
  %v51 = vld [vmem:[%s1 + $0xe8] sm:$0xff]
  %v52 = vld [vmem:[%s1 + $0xf0] sm:$0xff]
  %v53 = vld [vmem:[%s1 + $0xf8] sm:$0xff]
  %v54 = vld [vmem:[%s1 + $0x100] sm:$0xff]
  %v55 = vld [vmem:[%s1 + $0x108] sm:$0xff]
  %v56 = vld [vmem:[%s1 + $0x110] sm:$0xff]
  %v57 = vld [vmem:[%s1 + $0x118] sm:$0xff]
  %v58 = vld [vmem:[%s1 + $0x120] sm:$0xff]
  %v59 = vld [vmem:[%s1 + $0x128] sm:$0xff]
  %v60 = vld [vmem:[%s1 + $0x130] sm:$0xff]
  %v61 = vld [vmem:[%s1 + $0x138] sm:$0xff]
  %v62 = vld [vmem:[%s1 + $0x140] sm:$0xff]
  %v63 = vld [vmem:[%s1 + $0x148] sm:$0xff]
  %v64 = vld [vmem:[%s1 + $0x150] sm:$0xff]
  %v65 = vld [vmem:[%s1 + $0x158] sm:$0xff]
  %v66 = vld [vmem:[%s1 + $0x160] sm:$0xff]
  %v67 = vld [vmem:[%s1 + $0x168] sm:$0xff]
  %v68 = vld [vmem:[%s1 + $0x170] sm:$0xff]
  %v69 = vld [vmem:[%s1 + $0x178] sm:$0xff]
  %v70 = vld [vmem:[%s1 + $0x180] sm:$0xff]
  %v71 = vld [vmem:[%s1 + $0x188] sm:$0xff]
  %v72 = vld [vmem:[%s1 + $0x190] sm:$0xff]
  %v73 = vld [vmem:[%s1 + $0x198] sm:$0xff]
  %v74 = vld [vmem:[%s1 + $0x1a0] sm:$0xff]
  %v75 = vld [vmem:[%s1 + $0x1a8] sm:$0xff]
  %v76 = vld [vmem:[%s1 + $0x1b0] sm:$0xff]
  %v77 = vld [vmem:[%s1 + $0x1b8] sm:$0xff]
  %v78 = vld [vmem:[%s1 + $0x1c0] sm:$0xff]
  %v79 = vld [vmem:[%s1 + $0x1c8] sm:$0xff]
  %v80 = vld [vmem:[%s1 + $0x1d0] sm:$0xff]
  %v81 = vld [vmem:[%s1 + $0x1d8] sm:$0xff]
  %v82 = vld [vmem:[%s1 + $0x1e0] sm:$0xff]
  %v83 = vld [vmem:[%s1 + $0x1e8] sm:$0xff]
  %v84 = vld [vmem:[%s1 + $0x1f0] sm:$0xff]
  %v85 = vld [vmem:[%s1 + $0x1f8] sm:$0xff]
  %v86 = vld [vmem:[%s1 + $0x200] sm:$0xff]
  %v87 = vld [vmem:[%s1 + $0x208] sm:$0xff]
  %v88 = vld [vmem:[%s1 + $0x210] sm:$0xff]
  %v89 = vld [vmem:[%s1 + $0x218] sm:$0xff]
  %v90 = vld [vmem:[%s1 + $0x220] sm:$0xff]
  %v91 = vld [vmem:[%s1 + $0x228] sm:$0xff]
  %v92 = vld [vmem:[%s1 + $0x230] sm:$0xff]
  %v93 = vld [vmem:[%s1 + $0x238] sm:$0xff]
  %v94 = vld [vmem:[%s1 + $0x240] sm:$0xff]
  %v95 = vld [vmem:[%s1 + $0x248] sm:$0xff]
  %v96 = vld [vmem:[%s1 + $0x250] sm:$0xff]
  %v97 = vld [vmem:[%s1 + $0x258] sm:$0xff]
  %v98 = vld [vmem:[%s1 + $0x260] sm:$0xff]
  %v99 = vld [vmem:[%s1 + $0x268] sm:$0xff]
  %v100 = vld [vmem:[%s1 + $0x270] sm:$0xff]
  %v101 = vld [vmem:[%s1 + $0x278] sm:$0xff]
  %v102 = vld [vmem:[%s1 + $0x280] sm:$0xff]
  %v103 = vld [vmem:[%s1 + $0x288] sm:$0xff]
  %v104 = vld [vmem:[%s1 + $0x290] sm:$0xff]
  %v105 = vld [vmem:[%s1 + $0x298] sm:$0xff]
  %v106 = vld [vmem:[%s1 + $0x2a0] sm:$0xff]
  %v107 = vld [vmem:[%s1 + $0x2a8] sm:$0xff]
  %v108 = vld [vmem:[%s1 + $0x2b0] sm:$0xff]
  %v109 = vld [vmem:[%s1 + $0x2b8] sm:$0xff]
  %v110 = vld [vmem:[%s1 + $0x2c0] sm:$0xff]
  %v111 = vld [vmem:[%s1 + $0x2c8] sm:$0xff]
  %v112 = vld [vmem:[%s1 + $0x2d0] sm:$0xff]
  %v113 = vld [vmem:[%s1 + $0x2d8] sm:$0xff]
  %v114 = vld [vmem:[%s1 + $0x2e0] sm:$0xff]
  %v115 = vld [vmem:[%s1 + $0x2e8] sm:$0xff]
  %v116 = vld [vmem:[%s1 + $0x2f0] sm:$0xff]
  %v117 = vld [vmem:[%s1 + $0x2f8] sm:$0xff]
  %v118 = vld [vmem:[%s1 + $0x300] sm:$0xff]
  %v119 = vld [vmem:[%s1 + $0x308] sm:$0xff]
  %v120 = vld [vmem:[%s1 + $0x310] sm:$0xff]
  %v121 = vld [vmem:[%s1 + $0x318] sm:$0xff]
  %v122 = vld [vmem:[%s1 + $0x320] sm:$0xff]
  %v123 = vld [vmem:[%s1 + $0x328] sm:$0xff]
  %v124 = vld [vmem:[%s1 + $0x330] sm:$0xff]
  %v125 = vld [vmem:[%s1 + $0x338] sm:$0xff]
  %v126 = vld [vmem:[%s1 + $0x340] sm:$0xff]
  %v127 = vld [vmem:[%s1 + $0x348] sm:$0xff]
  %v128 = vld [vmem:[%s1 + $0x350] sm:$0xff]
  %v129 = vld [vmem:[%s1 + $0x358] sm:$0xff]
  %v130 = vld [vmem:[%s1 + $0x360] sm:$0xff]
  %v131 = vld [vmem:[%s1 + $0x368] sm:$0xff]
  %v132 = vld [vmem:[%s1 + $0x370] sm:$0xff]
  %v133 = vld [vmem:[%s1 + $0x378] sm:$0xff]
  %v135 = vcombine.high %v21, %v21
  %v137 = vunpack.c.l.s4 1966171168
  %v138 = vunpack.c.0.s8 %v137
  %v139 = vlaneseq
  %v140 = vshrl.u32 %v139, 7
  %v141 = vsub.s32 %v138, %v140
  %v142 = vrot.slane %v21, %v141
  %v144 = vunpack.c.l.s4 1966171168
  %v145 = vunpack.c.0.s8 %v144
  %v146 = vlaneseq
  %v147 = vshrl.u32 %v146, 7
  %v148 = vsub.s32 %v145, %v147
  %v149 = vrot.slane %v135, %v148
  %v150 = vcombine.high %v142, %v142
  %v151 = vcombine.high %v149, %v149
  %v153 = vunpack.c.l.s4 1966171168
  %v154 = vunpack.c.0.s8 %v153
  %v155 = vlaneseq
  %v156 = vshrl.u32 %v155, 7
  %v157 = vsub.s32 %v154, %v156
  %v158 = vrot.slane %v142, %v157
  %v160 = vunpack.c.l.s4 1966171168
  %v161 = vunpack.c.0.s8 %v160
  %v162 = vlaneseq
  %v163 = vshrl.u32 %v162, 7
  %v164 = vsub.s32 %v161, %v163
  %v165 = vrot.slane %v149, %v164
  %v167 = vunpack.c.l.s4 1966171168
  %v168 = vunpack.c.0.s8 %v167
  %v169 = vlaneseq
  %v170 = vshrl.u32 %v169, 7
  %v171 = vsub.s32 %v168, %v170
  %v172 = vrot.slane %v150, %v171
  %v174 = vunpack.c.l.s4 1966171168
  %v175 = vunpack.c.0.s8 %v174
  %v176 = vlaneseq
  %v177 = vshrl.u32 %v176, 7
  %v178 = vsub.s32 %v175, %v177
  %v179 = vrot.slane %v151, %v178
  %v180 = vcombine.high %v158, %v158
  %v181 = vcombine.high %v165, %v165
  %v182 = vcombine.high %v172, %v172
  %v302 = vunpack.c.l.b16 %v22
  %v303 = vunpack.c.h.b16 %v22
  %v304 = vunpack.c.l.b16 %v23
  %v305 = vunpack.c.h.b16 %v23
  %v306 = vunpack.c.l.b16 %v24
  %v307 = vunpack.c.h.b16 %v24
  %v308 = vunpack.c.l.b16 %v25
  %v309 = vunpack.c.h.b16 %v25
  %v310 = vunpack.c.l.b16 %v26
  %v311 = vunpack.c.h.b16 %v26
  %v312 = vunpack.c.l.b16 %v27
  %v313 = vunpack.c.h.b16 %v27
  %v314 = vunpack.c.l.b16 %v28
  %v315 = vunpack.c.h.b16 %v28
  %v316 = vunpack.c.l.b16 %v29
  %v317 = vunpack.c.h.b16 %v29
  %v318 = vunpack.c.l.b16 %v30
  %v319 = vunpack.c.h.b16 %v30
  %v320 = vunpack.c.l.b16 %v31
  %v321 = vunpack.c.h.b16 %v31
  %v322 = vunpack.c.l.b16 %v32
  %v323 = vunpack.c.h.b16 %v32
  %v324 = vunpack.c.l.b16 %v33
  %v325 = vunpack.c.h.b16 %v33
  %v326 = vunpack.c.l.b16 %v34
  %v327 = vunpack.c.h.b16 %v34
  %v328 = vunpack.c.l.b16 %v35
  %v329 = vunpack.c.h.b16 %v35
  %v330 = vunpack.c.l.b16 %v36
  %v331 = vunpack.c.h.b16 %v36
  %v332 = vunpack.c.l.b16 %v37
  %v333 = vunpack.c.h.b16 %v37
  %v334 = vunpack.c.l.b16 %v38
  %v335 = vunpack.c.h.b16 %v38
  %v336 = vunpack.c.l.b16 %v39
  %v337 = vunpack.c.h.b16 %v39
  %v338 = vunpack.c.l.b16 %v40
  %v339 = vunpack.c.h.b16 %v40
  %v340 = vunpack.c.l.b16 %v41
  %v341 = vunpack.c.h.b16 %v41
  %v342 = vunpack.c.l.b16 %v42
  %v343 = vunpack.c.h.b16 %v42
  %v344 = vunpack.c.l.b16 %v43
  %v345 = vunpack.c.h.b16 %v43
  %v346 = vunpack.c.l.b16 %v44
  %v347 = vunpack.c.h.b16 %v44
  %v348 = vunpack.c.l.b16 %v45
  %v349 = vunpack.c.h.b16 %v45
  %v350 = vunpack.c.l.b16 %v46
  %v351 = vunpack.c.h.b16 %v46
  %v352 = vunpack.c.l.b16 %v47
  %v353 = vunpack.c.h.b16 %v47
  %v354 = vunpack.c.l.b16 %v48
  %v355 = vunpack.c.h.b16 %v48
  %v356 = vunpack.c.l.b16 %v49
  %v357 = vunpack.c.h.b16 %v49
  %v358 = vunpack.c.l.b16 %v50
  %v359 = vunpack.c.h.b16 %v50
  %v360 = vunpack.c.l.b16 %v51
  %v361 = vunpack.c.h.b16 %v51
  %v362 = vunpack.c.l.b16 %v52
  %v363 = vunpack.c.h.b16 %v52
  %v364 = vunpack.c.l.b16 %v53
  %v365 = vunpack.c.h.b16 %v53
  %v366 = vunpack.c.l.b16 %v54
  %v367 = vunpack.c.h.b16 %v54
  %v368 = vunpack.c.l.b16 %v55
  %v369 = vunpack.c.h.b16 %v55
  %v370 = vunpack.c.l.b16 %v56
  %v371 = vunpack.c.h.b16 %v56
  %v372 = vunpack.c.l.b16 %v57
  %v373 = vunpack.c.h.b16 %v57
  %v374 = vunpack.c.l.b16 %v58
  %v375 = vunpack.c.h.b16 %v58
  %v376 = vunpack.c.l.b16 %v59
  %v377 = vunpack.c.h.b16 %v59
  %v378 = vunpack.c.l.b16 %v60
  %v379 = vunpack.c.h.b16 %v60
  %v380 = vunpack.c.l.b16 %v61
  %v381 = vunpack.c.h.b16 %v61
  %v382 = vunpack.c.l.b16 %v62
  %v383 = vunpack.c.h.b16 %v62
  %v384 = vunpack.c.l.b16 %v63
  %v385 = vunpack.c.h.b16 %v63
  %v386 = vunpack.c.l.b16 %v64
  %v387 = vunpack.c.h.b16 %v64
  %v388 = vunpack.c.l.b16 %v65
  %v389 = vunpack.c.h.b16 %v65
  %v390 = vunpack.c.l.b16 %v66
  %v391 = vunpack.c.h.b16 %v66
  %v392 = vunpack.c.l.b16 %v67
  %v393 = vunpack.c.h.b16 %v67
  %v394 = vunpack.c.l.b16 %v68
  %v395 = vunpack.c.h.b16 %v68
  %v396 = vunpack.c.l.b16 %v69
  %v397 = vunpack.c.h.b16 %v69
  %v398 = vunpack.c.l.b16 %v70
  %v399 = vunpack.c.h.b16 %v70
  %v400 = vunpack.c.l.b16 %v71
  %v401 = vunpack.c.h.b16 %v71
  %v402 = vunpack.c.l.b16 %v72
  %v403 = vunpack.c.h.b16 %v72
  %v404 = vunpack.c.l.b16 %v73
  %v405 = vunpack.c.h.b16 %v73
  %v406 = vunpack.c.l.b16 %v74
  %v407 = vunpack.c.h.b16 %v74
  %v408 = vunpack.c.l.b16 %v75
  %v409 = vunpack.c.h.b16 %v75
  %v410 = vunpack.c.l.b16 %v76
  %v411 = vunpack.c.h.b16 %v76
  %v412 = vunpack.c.l.b16 %v77
  %v413 = vunpack.c.h.b16 %v77
  %v414 = vunpack.c.l.b16 %v78
  %v415 = vunpack.c.h.b16 %v78
  %v416 = vunpack.c.l.b16 %v79
  %v417 = vunpack.c.h.b16 %v79
  %v418 = vunpack.c.l.b16 %v80
  %v419 = vunpack.c.h.b16 %v80
  %v420 = vunpack.c.l.b16 %v81
  %v421 = vunpack.c.h.b16 %v81
  %v422 = vunpack.c.l.b16 %v82
  %v423 = vunpack.c.h.b16 %v82
  %v424 = vunpack.c.l.b16 %v83
  %v425 = vunpack.c.h.b16 %v83
  %v426 = vunpack.c.l.b16 %v84
  %v427 = vunpack.c.h.b16 %v84
  %v428 = vunpack.c.l.b16 %v85
  %v429 = vunpack.c.h.b16 %v85
  %v430 = vunpack.c.l.b16 %v86
  %v431 = vunpack.c.h.b16 %v86
  %v432 = vunpack.c.l.b16 %v87
  %v433 = vunpack.c.h.b16 %v87
  %v434 = vunpack.c.l.b16 %v88
  %v435 = vunpack.c.h.b16 %v88
  %v436 = vunpack.c.l.b16 %v89
  %v437 = vunpack.c.h.b16 %v89
  %v438 = vunpack.c.l.b16 %v90
  %v439 = vunpack.c.h.b16 %v90
  %v440 = vunpack.c.l.b16 %v91
  %v441 = vunpack.c.h.b16 %v91
  %v442 = vunpack.c.l.b16 %v92
  %v443 = vunpack.c.h.b16 %v92
  %v444 = vunpack.c.l.b16 %v93
  %v445 = vunpack.c.h.b16 %v93
  %v446 = vunpack.c.l.b16 %v94
  %v447 = vunpack.c.h.b16 %v94
  %v448 = vunpack.c.l.b16 %v95
  %v449 = vunpack.c.h.b16 %v95
  %v450 = vunpack.c.l.b16 %v96
  %v451 = vunpack.c.h.b16 %v96
  %v452 = vunpack.c.l.b16 %v97
  %v453 = vunpack.c.h.b16 %v97
  %v454 = vunpack.c.l.b16 %v98
  %v455 = vunpack.c.h.b16 %v98
  %v456 = vunpack.c.l.b16 %v99
  %v457 = vunpack.c.h.b16 %v99
  %v458 = vunpack.c.l.b16 %v100
  %v459 = vunpack.c.h.b16 %v100
  %v460 = vunpack.c.l.b16 %v101
  %v461 = vunpack.c.h.b16 %v101
  %v462 = vunpack.c.l.b16 %v102
  %v463 = vunpack.c.h.b16 %v102
  %v464 = vunpack.c.l.b16 %v103
  %v465 = vunpack.c.h.b16 %v103
  %v466 = vunpack.c.l.b16 %v104
  %v467 = vunpack.c.h.b16 %v104
  %v468 = vunpack.c.l.b16 %v105
  %v469 = vunpack.c.h.b16 %v105
  %v470 = vunpack.c.l.b16 %v106
  %v471 = vunpack.c.h.b16 %v106
  %v472 = vunpack.c.l.b16 %v107
  %v473 = vunpack.c.h.b16 %v107
  %v474 = vunpack.c.l.b16 %v108
  %v475 = vunpack.c.h.b16 %v108
  %v476 = vunpack.c.l.b16 %v109
  %v477 = vunpack.c.h.b16 %v109
  %v478 = vunpack.c.l.b16 %v110
  %v479 = vunpack.c.h.b16 %v110
  %v480 = vunpack.c.l.b16 %v111
  %v481 = vunpack.c.h.b16 %v111
  %v482 = vunpack.c.l.b16 %v112
  %v483 = vunpack.c.h.b16 %v112
  %v484 = vunpack.c.l.b16 %v113
  %v485 = vunpack.c.h.b16 %v113
  %v486 = vunpack.c.l.b16 %v114
  %v487 = vunpack.c.h.b16 %v114
  %v488 = vunpack.c.l.b16 %v115
  %v489 = vunpack.c.h.b16 %v115
  %v490 = vunpack.c.l.b16 %v116
  %v491 = vunpack.c.h.b16 %v116
  %v492 = vunpack.c.l.b16 %v117
  %v493 = vunpack.c.h.b16 %v117
  %v494 = vunpack.c.l.b16 %v118
  %v495 = vunpack.c.h.b16 %v118
  %v496 = vunpack.c.l.b16 %v119
  %v497 = vunpack.c.h.b16 %v119
  %v498 = vunpack.c.l.b16 %v120
  %v499 = vunpack.c.h.b16 %v120
  %v500 = vunpack.c.l.b16 %v121
  %v501 = vunpack.c.h.b16 %v121
  %v502 = vunpack.c.l.b16 %v122
  %v503 = vunpack.c.h.b16 %v122
  %v504 = vunpack.c.l.b16 %v123
  %v505 = vunpack.c.h.b16 %v123
  %v506 = vunpack.c.l.b16 %v124
  %v507 = vunpack.c.h.b16 %v124
  %v508 = vunpack.c.l.b16 %v125
  %v509 = vunpack.c.h.b16 %v125
  %v510 = vunpack.c.l.b16 %v126
  %v511 = vunpack.c.h.b16 %v126
  %v512 = vunpack.c.l.b16 %v127
  %v513 = vunpack.c.h.b16 %v127
  %v514 = vunpack.c.l.b16 %v128
  %v515 = vunpack.c.h.b16 %v128
  %v516 = vunpack.c.l.b16 %v129
  %v517 = vunpack.c.h.b16 %v129
  %v518 = vunpack.c.l.b16 %v130
  %v519 = vunpack.c.h.b16 %v130
  %v520 = vunpack.c.l.b16 %v131
  %v521 = vunpack.c.h.b16 %v131
  %v522 = vunpack.c.l.b16 %v132
  %v523 = vunpack.c.h.b16 %v132
  %v524 = vunpack.c.l.b16 %v133
  %v525 = vunpack.c.h.b16 %v133
  %v526 = vpack.c.b16 %v304, %v302
  %v527 = vpack.c.b16 %v305, %v303
  %v528 = vpack.c.b16 %v308, %v306
  %v529 = vpack.c.b16 %v309, %v307
  %v530 = vpack.c.b16 %v312, %v310
  %v531 = vpack.c.b16 %v313, %v311
  %v532 = vpack.c.b16 %v316, %v314
  %v533 = vpack.c.b16 %v317, %v315
  %v534 = vpack.c.b16 %v320, %v318
  %v535 = vpack.c.b16 %v321, %v319
  %v536 = vpack.c.b16 %v324, %v322
  %v537 = vpack.c.b16 %v325, %v323
  %v538 = vpack.c.b16 %v328, %v326
  %v539 = vpack.c.b16 %v329, %v327
  %v540 = vpack.c.b16 %v332, %v330
  %v541 = vpack.c.b16 %v333, %v331
  %v542 = vpack.c.b16 %v336, %v334
  %v543 = vpack.c.b16 %v337, %v335
  %v544 = vpack.c.b16 %v340, %v338
  %v545 = vpack.c.b16 %v341, %v339
  %v546 = vpack.c.b16 %v344, %v342
  %v547 = vpack.c.b16 %v345, %v343
  %v548 = vpack.c.b16 %v348, %v346
  %v549 = vpack.c.b16 %v349, %v347
  %v550 = vpack.c.b16 %v352, %v350
  %v551 = vpack.c.b16 %v353, %v351
  %v552 = vpack.c.b16 %v356, %v354
  %v553 = vpack.c.b16 %v357, %v355
  %v554 = vpack.c.b16 %v360, %v358
  %v555 = vpack.c.b16 %v361, %v359
  %v556 = vpack.c.b16 %v364, %v362
  %v557 = vpack.c.b16 %v365, %v363
  %v558 = vpack.c.b16 %v368, %v366
  %v559 = vpack.c.b16 %v369, %v367
  %v560 = vpack.c.b16 %v372, %v370
  %v561 = vpack.c.b16 %v373, %v371
  %v562 = vpack.c.b16 %v376, %v374
  %v563 = vpack.c.b16 %v377, %v375
  %v564 = vpack.c.b16 %v380, %v378
  %v565 = vpack.c.b16 %v381, %v379
  %v566 = vpack.c.b16 %v384, %v382
  %v567 = vpack.c.b16 %v385, %v383
  %v568 = vpack.c.b16 %v388, %v386
  %v569 = vpack.c.b16 %v389, %v387
  %v570 = vpack.c.b16 %v392, %v390
  %v571 = vpack.c.b16 %v393, %v391
  %v572 = vpack.c.b16 %v396, %v394
  %v573 = vpack.c.b16 %v397, %v395
  %v574 = vpack.c.b16 %v400, %v398
  %v575 = vpack.c.b16 %v401, %v399
  %v576 = vpack.c.b16 %v404, %v402
  %v577 = vpack.c.b16 %v405, %v403
  %v578 = vpack.c.b16 %v408, %v406
  %v579 = vpack.c.b16 %v409, %v407
  %v580 = vpack.c.b16 %v412, %v410
  %v581 = vpack.c.b16 %v413, %v411
  %v582 = vpack.c.b16 %v416, %v414
  %v583 = vpack.c.b16 %v417, %v415
  %v584 = vpack.c.b16 %v420, %v418
  %v585 = vpack.c.b16 %v421, %v419
  %v586 = vpack.c.b16 %v424, %v422
  %v587 = vpack.c.b16 %v425, %v423
  %v588 = vpack.c.b16 %v428, %v426
  %v589 = vpack.c.b16 %v429, %v427
  %v590 = vpack.c.b16 %v432, %v430
  %v591 = vpack.c.b16 %v433, %v431
  %v592 = vpack.c.b16 %v436, %v434
  %v593 = vpack.c.b16 %v437, %v435
  %v594 = vpack.c.b16 %v440, %v438
  %v595 = vpack.c.b16 %v441, %v439
  %v596 = vpack.c.b16 %v444, %v442
  %v597 = vpack.c.b16 %v445, %v443
  %v598 = vpack.c.b16 %v448, %v446
  %v599 = vpack.c.b16 %v449, %v447
  %v600 = vpack.c.b16 %v452, %v450
  %v601 = vpack.c.b16 %v453, %v451
  %v602 = vpack.c.b16 %v456, %v454
  %v603 = vpack.c.b16 %v457, %v455
  %v604 = vpack.c.b16 %v460, %v458
  %v605 = vpack.c.b16 %v461, %v459
  %v606 = vpack.c.b16 %v464, %v462
  %v607 = vpack.c.b16 %v465, %v463
  %v608 = vpack.c.b16 %v468, %v466
  %v609 = vpack.c.b16 %v469, %v467
  %v610 = vpack.c.b16 %v472, %v470
  %v611 = vpack.c.b16 %v473, %v471
  %v612 = vpack.c.b16 %v476, %v474
  %v613 = vpack.c.b16 %v477, %v475
  %v614 = vpack.c.b16 %v480, %v478
  %v615 = vpack.c.b16 %v481, %v479
  %v616 = vpack.c.b16 %v484, %v482
  %v617 = vpack.c.b16 %v485, %v483
  %v618 = vpack.c.b16 %v488, %v486
  %v619 = vpack.c.b16 %v489, %v487
  %v620 = vpack.c.b16 %v492, %v490
  %v621 = vpack.c.b16 %v493, %v491
  %v622 = vpack.c.b16 %v496, %v494
  %v623 = vpack.c.b16 %v497, %v495
  %v624 = vpack.c.b16 %v500, %v498
  %v625 = vpack.c.b16 %v501, %v499
  %v626 = vpack.c.b16 %v504, %v502
  %v627 = vpack.c.b16 %v505, %v503
  %v628 = vpack.c.b16 %v508, %v506
  %v629 = vpack.c.b16 %v509, %v507
  %v630 = vpack.c.b16 %v512, %v510
  %v631 = vpack.c.b16 %v513, %v511
  %v632 = vpack.c.b16 %v516, %v514
  %v633 = vpack.c.b16 %v517, %v515
  %v634 = vpack.c.b16 %v520, %v518
  %v635 = vpack.c.b16 %v521, %v519
  %v636 = vpack.c.b16 %v524, %v522
  %v637 = vpack.c.b16 %v525, %v523
  %750 = vmatprep.subr.bf16.mxu0 %v527
  %751 = vmatpush1.bf16.msra.mxu0 %v526
  %752 = vmatprep.subr.bf16.mxu0 %v529
  %753 = vmatpush1.bf16.msra.mxu0 %v528
  %754 = vmatprep.subr.bf16.mxu0 %v531
  %755 = vmatpush1.bf16.msra.mxu0 %v530
  %756 = vmatprep.subr.bf16.mxu0 %v533
  %757 = vmatpush1.bf16.msra.mxu0 %v532
  %758 = vmatprep.subr.bf16.mxu0 %v535
  %759 = vmatpush1.bf16.msra.mxu0 %v534
  %760 = vmatprep.subr.bf16.mxu0 %v537
  %761 = vmatpush1.bf16.msra.mxu0 %v536
  %762 = vmatprep.subr.bf16.mxu0 %v539
  %763 = vmatpush1.bf16.msra.mxu0 %v538
  %764 = vmatprep.subr.bf16.mxu0 %v541
  %765 = vmatpush1.bf16.msra.mxu0 %v540
  %766 = vmatprep.subr.bf16.mxu0 %v543
  %767 = vmatpush1.bf16.msra.mxu0 %v542
  %768 = vmatprep.subr.bf16.mxu0 %v545
  %769 = vmatpush1.bf16.msra.mxu0 %v544
  %770 = vmatprep.subr.bf16.mxu0 %v547
  %771 = vmatpush1.bf16.msra.mxu0 %v546
  %772 = vmatprep.subr.bf16.mxu0 %v549
  %773 = vmatpush1.bf16.msra.mxu0 %v548
  %774 = vmatprep.subr.bf16.mxu0 %v551
  %775 = vmatpush1.bf16.msra.mxu0 %v550
  %776 = vmatprep.subr.bf16.mxu0 %v553
  %777 = vmatpush1.bf16.msra.mxu0 %v552
  %778 = vmatprep.subr.bf16.mxu0 %v555
  %779 = vmatpush1.bf16.msra.mxu0 %v554
  %780 = vmatprep.subr.bf16.mxu0 %v557
  %781 = vmatpush1.bf16.msra.mxu0 %v556
  %782 = vmatprep.mubr.bf16.mxu0 %v172
  %783 = vmatmul.mubr.bf16.gmra.mrb[0].mxu0 %v158
  %v784 = vpop.f32.mrb[0].mxu0
  %v785 = vadd.f32 0.0, %v784
  %v786 = vpop.f32.mrb[0].mxu0
  %v787 = vadd.f32 0.0, %v786
  %v788 = vpop.f32.mrb[0].mxu0
  %v789 = vpop.f32.mrb[0].mxu0
  %790 = vdwg.mxu0
  %791 = vmatprep.subr.bf16.mxu0 %v559
  %792 = vmatpush1.bf16.msra.mxu0 %v558
  %793 = vmatprep.subr.bf16.mxu0 %v561
  %794 = vmatpush1.bf16.msra.mxu0 %v560
  %795 = vmatprep.subr.bf16.mxu0 %v563
  %796 = vmatpush1.bf16.msra.mxu0 %v562
  %797 = vmatprep.subr.bf16.mxu0 %v565
  %798 = vmatpush1.bf16.msra.mxu0 %v564
  %799 = vmatprep.subr.bf16.mxu0 %v567
  %800 = vmatpush1.bf16.msra.mxu0 %v566
  %801 = vmatprep.subr.bf16.mxu0 %v569
  %802 = vmatpush1.bf16.msra.mxu0 %v568
  %803 = vmatprep.subr.bf16.mxu0 %v571
  %804 = vmatpush1.bf16.msra.mxu0 %v570
  %805 = vmatprep.subr.bf16.mxu0 %v573
  %806 = vmatpush1.bf16.msra.mxu0 %v572
  %807 = vmatprep.subr.bf16.mxu0 %v575
  %808 = vmatpush1.bf16.msra.mxu0 %v574
  %809 = vmatprep.subr.bf16.mxu0 %v577
  %810 = vmatpush1.bf16.msra.mxu0 %v576
  %811 = vmatprep.subr.bf16.mxu0 %v579
  %812 = vmatpush1.bf16.msra.mxu0 %v578
  %813 = vmatprep.subr.bf16.mxu0 %v581
  %814 = vmatpush1.bf16.msra.mxu0 %v580
  %815 = vmatprep.subr.bf16.mxu0 %v583
  %816 = vmatpush1.bf16.msra.mxu0 %v582
  %817 = vmatprep.subr.bf16.mxu0 %v585
  %818 = vmatpush1.bf16.msra.mxu0 %v584
  %819 = vmatprep.subr.bf16.mxu0 %v587
  %820 = vmatpush1.bf16.msra.mxu0 %v586
  %821 = vmatprep.subr.bf16.mxu0 %v589
  %822 = vmatpush1.bf16.msra.mxu0 %v588
  %823 = vmatprep.mubr.bf16.mxu0 %v182
  %824 = vmatmul.mubr.bf16.gmra.mrb[0].mxu0 %v180
  %v825 = vpop.f32.mrb[0].mxu0
  %v826 = vadd.f32 %v785, %v825
  %v827 = vpop.f32.mrb[0].mxu0
  %v828 = vadd.f32 %v787, %v827
  %v829 = vpop.f32.mrb[0].mxu0
  %v830 = vpop.f32.mrb[0].mxu0
  %831 = vdwg.mxu0
  %832 = vmatprep.subr.bf16.mxu0 %v591
  %833 = vmatpush1.bf16.msra.mxu0 %v590
  %834 = vmatprep.subr.bf16.mxu0 %v593
  %835 = vmatpush1.bf16.msra.mxu0 %v592
  %836 = vmatprep.subr.bf16.mxu0 %v595
  %837 = vmatpush1.bf16.msra.mxu0 %v594
  %838 = vmatprep.subr.bf16.mxu0 %v597
  %839 = vmatpush1.bf16.msra.mxu0 %v596
  %840 = vmatprep.subr.bf16.mxu0 %v599
  %841 = vmatpush1.bf16.msra.mxu0 %v598
  %842 = vmatprep.subr.bf16.mxu0 %v601
  %843 = vmatpush1.bf16.msra.mxu0 %v600
  %844 = vmatprep.subr.bf16.mxu0 %v603
  %845 = vmatpush1.bf16.msra.mxu0 %v602
  %846 = vmatprep.subr.bf16.mxu0 %v605
  %847 = vmatpush1.bf16.msra.mxu0 %v604
  %848 = vmatprep.subr.bf16.mxu0 %v607
  %849 = vmatpush1.bf16.msra.mxu0 %v606
  %850 = vmatprep.subr.bf16.mxu0 %v609
  %851 = vmatpush1.bf16.msra.mxu0 %v608
  %852 = vmatprep.subr.bf16.mxu0 %v611
  %853 = vmatpush1.bf16.msra.mxu0 %v610
  %854 = vmatprep.subr.bf16.mxu0 %v613
  %855 = vmatpush1.bf16.msra.mxu0 %v612
  %856 = vmatprep.subr.bf16.mxu0 %v615
  %857 = vmatpush1.bf16.msra.mxu0 %v614
  %858 = vmatprep.subr.bf16.mxu0 %v617
  %859 = vmatpush1.bf16.msra.mxu0 %v616
  %860 = vmatprep.subr.bf16.mxu0 %v619
  %861 = vmatpush1.bf16.msra.mxu0 %v618
  %862 = vmatprep.subr.bf16.mxu0 %v621
  %863 = vmatpush1.bf16.msra.mxu0 %v620
  %864 = vmatprep.mubr.bf16.mxu0 %v179
  %865 = vmatmul.mubr.bf16.gmra.mrb[0].mxu0 %v165
  %v866 = vpop.f32.mrb[0].mxu0
  %v867 = vadd.f32 %v826, %v866
  %v868 = vpop.f32.mrb[0].mxu0
  %v869 = vadd.f32 %v828, %v868
  %v870 = vpop.f32.mrb[0].mxu0
  %v871 = vpop.f32.mrb[0].mxu0
  %872 = vdwg.mxu0
  %873 = vmatprep.subr.bf16.mxu0 %v623
  %874 = vmatpush1.bf16.msra.mxu0 %v622
  %875 = vmatprep.subr.bf16.mxu0 %v625
  %876 = vmatpush1.bf16.msra.mxu0 %v624
  %877 = vmatprep.subr.bf16.mxu0 %v627
  %878 = vmatpush1.bf16.msra.mxu0 %v626
  %879 = vmatprep.subr.bf16.mxu0 %v629
  %880 = vmatpush1.bf16.msra.mxu0 %v628
  %881 = vmatprep.subr.bf16.mxu0 %v631
  %882 = vmatpush1.bf16.msra.mxu0 %v630
  %883 = vmatprep.subr.bf16.mxu0 %v633
  %884 = vmatpush1.bf16.msra.mxu0 %v632
  %885 = vmatprep.subr.bf16.mxu0 %v635
  %886 = vmatpush1.bf16.msra.mxu0 %v634
  %887 = vmatprep.subr.bf16.mxu0 %v637
  %888 = vmatpush1.bf16.msra.mxu0 %v636
  %889 = vmatprep.subr.bf16.mxu0 0
  %890 = vmatpush1.bf16.msra.mxu0 0
  %891 = vmatprep.subr.bf16.mxu0 0
  %892 = vmatpush1.bf16.msra.mxu0 0
  %893 = vmatprep.subr.bf16.mxu0 0
  %894 = vmatpush1.bf16.msra.mxu0 0
  %895 = vmatprep.subr.bf16.mxu0 0
  %896 = vmatpush1.bf16.msra.mxu0 0
  %897 = vmatprep.subr.bf16.mxu0 0
  %898 = vmatpush1.bf16.msra.mxu0 0
  %899 = vmatprep.subr.bf16.mxu0 0
  %900 = vmatpush1.bf16.msra.mxu0 0
  %901 = vmatprep.subr.bf16.mxu0 0
  %902 = vmatpush1.bf16.msra.mxu0 0
  %903 = vmatprep.subr.bf16.mxu0 0
  %904 = vmatpush1.bf16.msra.mxu0 0
  %905 = vmatprep.mubr.bf16.mxu0 0
  %906 = vmatmul.mubr.bf16.gmra.mrb[0].mxu0 %v181
  %v907 = vpop.f32.mrb[0].mxu0
  %v908 = vadd.f32 %v867, %v907
  %v909 = vpop.f32.mrb[0].mxu0
  %v910 = vadd.f32 %v869, %v909
  %v911 = vpop.f32.mrb[0].mxu0
  %v912 = vpop.f32.mrb[0].mxu0
  %913 = vdwg.mxu0
  %v916 = vcombine.low %v908, %v910
  %v918 = vunpack.c.l.s4 1983009808
  %v919 = vunpack.c.0.s8 %v918
  %v920 = vlaneseq
  %v921 = vshrl.u32 %v920, 7
  %v922 = vsub.s32 %v919, %v921
  %v923 = vrot.slane %v916, %v922
  %v925 = vadd.f32 %v20, %v923
  %926 = vst [vmem:[#allocation2] sm:$0xf] %v925
  // Predicated region
  $region18: #{forward.6} parent=0 // pred_check
    %p927 = pneg %p15
  $region19: #{forward.6} parent=0 // pred_check_branch
    %929 = sbr.rel (%p927) target = $region21
  $region20: #{forward.6} parent=0 // pred_region
    %v930 = vld [vmem:[#allocation2] sm:$0xf]
    %v931 = vld [vmem:[%s2] sm:$0x3]
    %v933 = vlaneseq
    %v934 = vshrl.u32 %v933, 7
    %v935 = vsub.s32 0, %v934
    %v936 = vrot.slane %v931, %v935
    %v937 = vlaneseq
    %v938 = vshrl.u32 %v937, 7
    %v939 = vsub.s32 1, %v938
    %v940 = vrot.slane %v931, %v939
    %v941 = vcombine.low %v936, %v940
    %v943 = vunpack.c.l.s4 1983009808
    %v944 = vunpack.c.0.s8 %v943
    %v945 = vlaneseq
    %v946 = vshrl.u32 %v945, 7
    %v947 = vsub.s32 %v944, %v946
    %v948 = vrot.slane %v941, %v947
    %v950 = vadd.f32 %v930, %v948
    %v953 = vunpack.c.l.s4 1983009808
    %v954 = vunpack.c.0.s8 %v953
    %v955 = vlaneseq
    %v956 = vshrl.u32 %v955, 7
    %v957 = vsub.s32 %v954, %v956
    %v958 = vrot.slane %v950, %v957
    %v959 = vcombine.high %v958, %v958
    %v962 = vpack.c.bf16 %v958, %v958
    %v963 = vpack.c.bf16 %v959, %v959
    %v966 = vcombine.low %v962, %v963
    %v968 = vunpack.c.l.s4 1966171168
    %v969 = vunpack.c.0.s8 %v968
    %v970 = vlaneseq
    %v971 = vshrl.u32 %v970, 7
    %v972 = vsub.s32 %v969, %v971
    %v973 = vrot.slane %v966, %v972
    %v975 = vunpack.c.l.s4 1966171168
    %v976 = vunpack.c.0.s8 %v975
    %v977 = vlaneseq
    %v978 = vshrl.u32 %v977, 7
    %v979 = vsub.s32 %v976, %v978
    %v980 = vrot.slane %v973, %v979
    %982 = vst [vmem:[%s3] sm:$0x3] %v980
  $region21: #{forward.6} parent=0 // pred_fallthru
    _
  // Predicated region
  $region22: #{forward.6} parent=0 // pred_check
    _
  $region23: #{forward.6} parent=0 // pred_check_branch
    %984 = sbr.rel (0) target = $region25
  $region24: #{forward.6} parent=0 // pred_region
    _
  $region25: #{forward.6} parent=0 // pred_fallthru
    _
  // Predicated region
  $region26: #{forward.6} parent=0 // pred_check
    _
  $region27: #{forward.6} parent=0 // pred_check_branch
    %986 = sbr.rel (0) target = $region29
  $region28: #{forward.6} parent=0 // pred_region
    _
  $region29: #{forward.6} parent=0 // pred_fallthru
    _

</llo_original>
